<compile_context>
chip_gen: v6e
topology: v6e:2x2x1
jax: 0.10.0
libtpu: 0.0.40
codegen_flags: <defaults>
</compile_context>

<pallas_src>
import functools

import jax
import jax.numpy as jnp
from jax.experimental import pallas as pl
from jax.experimental.pallas import tpu as pltpu

LANE = 128          # TPU lane width; all matmul / store widths padded to this
NEG_SLOPE = 0.2


def _round_up(x, m):
    return ((x + m - 1) // m) * m


def _disc_kernel(x_ref, w_ref, b_ref, out_ref, *bufs, layer_meta, block_batch):
    """Fused 5-layer forward for `block_batch` images (grid axis = batch blocks).

    x_ref  : (bb, H0+2, icp0) f32  row-padded, lane-padded input images
    w_ref  : (L, Kmax, ocpmax) bf16  per-layer K-fused banded conv weights
    b_ref  : (L, 1, ocpmax) f32      per-layer tiled bias rows
    out_ref: (bb, Ho_last, ocp_last) bf16
    bufs   : f32 VMEM scratch; bufs[l] holds layer l+1's row-padded input
             with shape (bb, hin+2, icp).

    layer_meta[l] = (hin, ho, icp, ocp, leaky).
    """
    n_layers = len(layer_meta)
    bb = block_batch

    src = x_ref
    for l, (hin, ho, icp, ocp, leaky) in enumerate(layer_meta):
        klen = 4 * icp
        # In-kernel "im2col": per image, 4 stride-2 row slabs (one per kernel
        # row kh), lane-concatenated (K-fusion) and stacked over the batch so
        # the MXU sees a single (bb*ho, 4*icp) LHS per layer.
        pieces = []
        for b in range(bb):
            sb = src.at[b]                                  # 2-D (hin+2, icp) view
            cols = []
            for kh in range(4):
                if ho > 1:
                    cols.append(sb[pl.ds(kh, ho, stride=2), :])
                else:
                    cols.append(sb[pl.ds(kh, 1), :])
            pieces.append(jnp.concatenate(cols, axis=-1))   # (ho, 4*icp)
        rows = pieces[0] if bb == 1 else jnp.concatenate(pieces, axis=0)

        w = w_ref[l]                                        # (Kmax, ocpmax) bf16
        if w.shape[0] != klen or w.shape[1] != ocp:
            w = w[:klen, :ocp]
        bias = b_ref[l]                                     # (1, ocpmax) f32
        if bias.shape[1] != ocp:
            bias = bias[:, :ocp]

        acc = jnp.dot(rows.astype(jnp.bfloat16), w,
                      preferred_element_type=jnp.float32)   # (bb*ho, ocp) f32
        acc = acc + bias
        if leaky:
            acc = jnp.maximum(acc, NEG_SLOPE * acc)         # LeakyReLU(0.2)

        if l + 1 < n_layers:
            dst = bufs[l]
            zrow = jnp.zeros((bb, 1, ocp), jnp.float32)
            dst[:, pl.ds(0, 1), :] = zrow                   # vertical zero padding
            dst[:, pl.ds(ho + 1, 1), :] = zrow
            dst[:, pl.ds(1, ho), :] = acc.reshape(bb, ho, ocp)
            src = dst
        else:
            out_ref[...] = acc.reshape(bb, ho, ocp).astype(out_ref.dtype)


def _make_layer_mats(w_oihw, bias, w_in, icp, ocp):
    """K-fused block-banded weight matrix for a k=4, s=2, p=1 conv on (H, W*Cin) rows.

    Returns W of shape (4*icp, ocp) in bf16 with
      W[kh*icp + w*Cin + cin, wo*Cout + cout] = w_oihw[cout, cin, kh, w - (2*wo - 1)]
    (zero outside the band -> horizontal padding handled implicitly) plus the
    tiled bias row (1, ocp) in f32.
    """
    cout, cin, kh_dim, kw_dim = w_oihw.shape
    w_out = w_in // 2
    win_idx = jnp.arange(w_in)
    src_base = 2 * jnp.arange(w_out) - 1
    mats = []
    for kh in range(kh_dim):
        m = jnp.zeros((w_in * cin, w_out * cout), jnp.float32)
        for dw in range(kw_dim):
            sel = (win_idx[:, None] == (src_base + dw)[None, :]).astype(jnp.float32)
            m = m + jnp.kron(sel, jnp.transpose(w_oihw[:, :, kh, dw]))
        mats.append(m)
    big = jnp.stack(mats, axis=0)                           # (4, win*cin, wout*cout)
    big = jnp.pad(big, ((0, 0), (0, icp - w_in * cin), (0, ocp - w_out * cout)))
    big = big.reshape(kh_dim * icp, ocp)                    # K-fused banded matrix
    brow = jnp.pad(jnp.tile(bias, w_out), (0, ocp - w_out * cout))
    return big.astype(jnp.bfloat16), brow.reshape(1, ocp).astype(jnp.float32)


def discriminator_forward(params, x_nchw, block_batch=None):
    """NCHW f32 input -> NCHW f32 output, matching the PyTorch Discriminator."""
    n, cin0, h0, w0 = x_nchw.shape
    n_layers = len(params)

    # Static per-layer geometry.
    geom = []
    hin, win, cin = h0, w0, cin0
    for li, (w, _) in enumerate(params):
        cout = w.shape[0]
        ho, wo = hin // 2, win // 2
        geom.append(dict(hin=hin, ho=ho, win=win, wo=wo, cin=cin, cout=cout,
                         icp=_round_up(max(win * cin, 1), LANE),
                         ocp=_round_up(max(wo * cout, 1), LANE),
                         leaky=(li + 1 < n_layers)))
        hin, win, cin = ho, wo, cout
    g0, gl = geom[0], geom[-1]

    # Batch block: fill the MXU M dim but keep grid >= 2 for v7x's two TCs.
    if block_batch is None:
        block_batch = max(1, min(8, n // 2)) if n > 1 else 1
    bb = block_batch
    n_pad = _round_up(n, bb)
    n_grid = n_pad // bb

    # K-fused banded bf16 weights + tiled f32 bias rows, stacked over layers
    # into single operands (constant index maps -> DMA'd once, stay resident).
    kmax = max(4 * g['icp'] for g in geom)
    ocpmax = max(g['ocp'] for g in geom)
    w_list, b_list = [], []
    for (w, b), g in zip(params, geom):
        big, brow = _make_layer_mats(w, b, g['win'], g['icp'], g['ocp'])
        w_list.append(jnp.pad(big, ((0, kmax - big.shape[0]),
                                    (0, ocpmax - big.shape[1]))))
        b_list.append(jnp.pad(brow, ((0, 0), (0, ocpmax - brow.shape[1]))))
    w_all = jnp.stack(w_list)                               # (L, kmax, ocpmax) bf16
    b_all = jnp.stack(b_list)                               # (L, 1, ocpmax) f32

    # Input as lane-dense (N_pad, H0+2, icp0) rows with vertical zero padding
    # and lane padding baked in -> no in-kernel staging copy for layer 0.
    x = jnp.transpose(x_nchw, (0, 2, 3, 1)).reshape(n, h0, w0 * cin0)
    x = jnp.pad(x, ((0, n_pad - n), (1, 1), (0, g0['icp'] - w0 * cin0)))

    layer_meta = tuple((g['hin'], g['ho'], g['icp'], g['ocp'], g['leaky'])
                       for g in geom)
    kernel = functools.partial(_disc_kernel, layer_meta=layer_meta,
                               block_batch=bb)

    flops = sum(2 * n_pad * g['ho'] * g['wo'] * g['cout'] * g['cin'] * 16
                for g in geom)
    bytes_accessed = (x.size * 4 + w_all.size * 2 + b_all.size * 4
                      + n_pad * gl['ho'] * gl['ocp'] * 2)

    out = pl.pallas_call(
        kernel,
        out_shape=jax.ShapeDtypeStruct((n_pad, gl['ho'], gl['ocp']), jnp.bfloat16),
        grid=(n_grid,),
        in_specs=[
            pl.BlockSpec((bb, h0 + 2, g0['icp']), lambda g: (g, 0, 0)),
            pl.BlockSpec((n_layers, kmax, ocpmax), lambda g: (0, 0, 0)),
            pl.BlockSpec((n_layers, 1, ocpmax), lambda g: (0, 0, 0)),
        ],
        out_specs=pl.BlockSpec((bb, gl['ho'], gl['ocp']), lambda g: (g, 0, 0)),
        scratch_shapes=[pltpu.VMEM((bb, g['hin'] + 2, g['icp']), jnp.float32)
                        for g in geom[1:]],
        compiler_params=pltpu.CompilerParams(
            dimension_semantics=("parallel",)),             # batch blocks over 2 TCs
        cost_estimate=pl.CostEstimate(flops=flops, transcendentals=0,
                                      bytes_accessed=bytes_accessed),
    )(x, w_all, b_all)

    out = out[:n, :, :gl['wo'] * gl['cout']].astype(jnp.float32)
    out = out.reshape(n, gl['ho'], gl['wo'], gl['cout'])
    return jnp.transpose(out, (0, 3, 1, 2))


def init_discriminator_params(key, num_classes, ndf):
    chans = [num_classes, ndf, ndf * 2, ndf * 4, ndf * 8, 1]
    params = []
    for i in range(5):
        cin, cout = chans[i], chans[i + 1]
        key, kw, kb = jax.random.split(key, 3)
        fan_in = cin * 4 * 4
        bound = 1.0 / (fan_in ** 0.5)
        w = jax.random.uniform(kw, (cout, cin, 4, 4), jnp.float32, -bound, bound)
        b = jax.random.uniform(kb, (cout,), jnp.float32, -bound, bound)
        params.append((w, b))
    return params


def _reference_forward(params, x_nchw):
    # Pure-JAX f32 reference (lax conv), used only to validate the Pallas path.
    x = x_nchw
    for i, (w, b) in enumerate(params):
        x = jax.lax.conv_general_dilated(
            x, w, window_strides=(2, 2), padding=((1, 1), (1, 1)),
            dimension_numbers=("NCHW", "OIHW", "NCHW"))
        x = x + b[None, :, None, None]
        if i < 4:
            x = jnp.where(x >= 0, x, 0.2 * x)
    return x


if __name__ == "__main__":
    num_classes, ndf = 4, 8
    batch, H, W = 2, 32, 32   # five stride-2 convs require H, W >= 32

    key = jax.random.PRNGKey(0)
    key, kx = jax.random.split(key)
    x = jax.random.normal(kx, (batch, num_classes, H, W), jnp.float32)
    params = init_discriminator_params(key, num_classes, ndf)

    out = jax.block_until_ready(discriminator_forward(params, x))
    ref = jax.block_until_ready(_reference_forward(params, x))

    assert out.shape == (batch, 1, H // 32, W // 32), out.shape
    # bf16 MXU operands (f32 accumulation) + bf16 output store vs f32 lax.conv.
    assert jnp.allclose(out, ref, rtol=3e-2, atol=4e-2), \
        float(jnp.max(jnp.abs(out - ref)))

    print("KERNEL_OK")
</pallas_src>

<mosaic_0001>
module attributes {stable_mosaic.version = 11 : i64} {
  func.func @_disc_kernel(%arg0: i32, %arg1: memref<1x34x128xf32, #tpu.memory_space<vmem>>, %arg2: memref<5x512x128xbf16, #tpu.memory_space<vmem>>, %arg3: memref<5x1x128xf32, #tpu.memory_space<vmem>>, %arg4: memref<1x1x128xbf16, #tpu.memory_space<vmem>>, %arg5: memref<1x18x128xf32, #tpu.memory_space<vmem>>, %arg6: memref<1x10x128xf32, #tpu.memory_space<vmem>>, %arg7: memref<1x6x128xf32, #tpu.memory_space<vmem>>, %arg8: memref<1x4x128xf32, #tpu.memory_space<vmem>>) attributes {dimension_semantics = [#tpu.dimension_semantics<parallel>], iteration_bounds = array<i64: 2>, scalar_prefetch = 0 : i64, scratch_operands = 4 : i64, tpu.core_type = #tpu.core_type<tc>, window_params = [{transform_indices = @transform_0, window_bounds = array<i64: 1, 34, 128>}, {pipeline_mode = #tpu.pipeline_mode<synchronous>, transform_indices = @transform_1, window_bounds = array<i64: 5, 512, 128>}, {pipeline_mode = #tpu.pipeline_mode<synchronous>, transform_indices = @transform_2, window_bounds = array<i64: 5, 1, 128>}, {transform_indices = @transform_3, window_bounds = array<i64: 1, 1, 128>}]} {
    %c0_i32 = arith.constant 0 : i32
    %c0_i32_0 = arith.constant 0 : i32
    %c0_i32_1 = arith.constant 0 : i32
    %0 = tpu.memref_slice %arg1[%c0_i32, %c0_i32_0, %c0_i32_1] : memref<1x34x128xf32, #tpu.memory_space<vmem>> -> memref<1x34x128xf32, #tpu.memory_space<vmem>>
    %1 = tpu.memref_squeeze %0 : memref<1x34x128xf32, #tpu.memory_space<vmem>> -> memref<34x128xf32, #tpu.memory_space<vmem>>
    %c0 = arith.constant 0 : index
    %c0_2 = arith.constant 0 : index
    %2 = tpu.strided_load %1[%c0, %c0_2] {strides = array<i32: 2, 1>} : memref<34x128xf32, #tpu.memory_space<vmem>>, vector<16x128xf32>
    %c0_i32_3 = arith.constant 0 : i32
    %c0_i32_4 = arith.constant 0 : i32
    %c0_i32_5 = arith.constant 0 : i32
    %3 = tpu.memref_slice %arg1[%c0_i32_3, %c0_i32_4, %c0_i32_5] : memref<1x34x128xf32, #tpu.memory_space<vmem>> -> memref<1x34x128xf32, #tpu.memory_space<vmem>>
    %4 = tpu.memref_squeeze %3 : memref<1x34x128xf32, #tpu.memory_space<vmem>> -> memref<34x128xf32, #tpu.memory_space<vmem>>
    %c1 = arith.constant 1 : index
    %c0_6 = arith.constant 0 : index
    %5 = tpu.strided_load %4[%c1, %c0_6] {strides = array<i32: 2, 1>} : memref<34x128xf32, #tpu.memory_space<vmem>>, vector<16x128xf32>
    %c0_i32_7 = arith.constant 0 : i32
    %c0_i32_8 = arith.constant 0 : i32
    %c0_i32_9 = arith.constant 0 : i32
    %6 = tpu.memref_slice %arg1[%c0_i32_7, %c0_i32_8, %c0_i32_9] : memref<1x34x128xf32, #tpu.memory_space<vmem>> -> memref<1x34x128xf32, #tpu.memory_space<vmem>>
    %7 = tpu.memref_squeeze %6 : memref<1x34x128xf32, #tpu.memory_space<vmem>> -> memref<34x128xf32, #tpu.memory_space<vmem>>
    %c2 = arith.constant 2 : index
    %c0_10 = arith.constant 0 : index
    %8 = tpu.strided_load %7[%c2, %c0_10] {strides = array<i32: 2, 1>} : memref<34x128xf32, #tpu.memory_space<vmem>>, vector<16x128xf32>
    %c0_i32_11 = arith.constant 0 : i32
    %c0_i32_12 = arith.constant 0 : i32
    %c0_i32_13 = arith.constant 0 : i32
    %9 = tpu.memref_slice %arg1[%c0_i32_11, %c0_i32_12, %c0_i32_13] : memref<1x34x128xf32, #tpu.memory_space<vmem>> -> memref<1x34x128xf32, #tpu.memory_space<vmem>>
    %10 = tpu.memref_squeeze %9 : memref<1x34x128xf32, #tpu.memory_space<vmem>> -> memref<34x128xf32, #tpu.memory_space<vmem>>
    %c3 = arith.constant 3 : index
    %c0_14 = arith.constant 0 : index
    %11 = tpu.strided_load %10[%c3, %c0_14] {strides = array<i32: 2, 1>} : memref<34x128xf32, #tpu.memory_space<vmem>>, vector<16x128xf32>
    %12 = tpu.concatenate %2, %5, %8, %11 in 1 : vector<16x128xf32>, vector<16x128xf32>, vector<16x128xf32>, vector<16x128xf32> -> vector<16x512xf32>
    %c0_15 = arith.constant 0 : index
    %c0_16 = arith.constant 0 : index
    %c0_17 = arith.constant 0 : index
    %13 = vector.load %arg2[%c0_15, %c0_16, %c0_17] : memref<5x512x128xbf16, #tpu.memory_space<vmem>>, vector<1x512x128xbf16>
    %14 = vector.shape_cast %13 : vector<1x512x128xbf16> to vector<512x128xbf16>
    %c0_18 = arith.constant 0 : index
    %c0_19 = arith.constant 0 : index
    %c0_20 = arith.constant 0 : index
    %15 = vector.load %arg3[%c0_18, %c0_19, %c0_20] : memref<5x1x128xf32, #tpu.memory_space<vmem>>, vector<1x1x128xf32>
    %16 = vector.shape_cast %15 : vector<1x1x128xf32> to vector<1x128xf32>
    %17 = arith.truncf %12 : vector<16x512xf32> to vector<16x512xbf16>
    %cst = arith.constant dense<0.000000e+00> : vector<16x128xf32>
    %18 = tpu.matmul %17, %14, %cst {dimension_numbers = #tpu.dot_dimension_numbers<[1], [0], [0], [1], [0, 0, 1, 1], [], []>} : vector<16x512xbf16>, vector<512x128xbf16>, vector<16x128xf32> -> vector<16x128xf32>
    %19 = vector.broadcast %16 : vector<1x128xf32> to vector<16x128xf32>
    %20 = arith.addf %18, %19 : vector<16x128xf32>
    %cst_21 = arith.constant 2.000000e-01 : f32
    %21 = vector.broadcast %cst_21 : f32 to vector<16x128xf32>
    %22 = arith.mulf %21, %20 : vector<16x128xf32>
    %23 = arith.maximumf %20, %22 : vector<16x128xf32>
    %cst_22 = arith.constant 0.000000e+00 : f32
    %24 = vector.broadcast %cst_22 : f32 to vector<1x1x128xf32>
    %c0_23 = arith.constant 0 : index
    %c0_24 = arith.constant 0 : index
    %c0_25 = arith.constant 0 : index
    %25 = vector.load %arg5[%c0_23, %c0_24, %c0_25] : memref<1x18x128xf32, #tpu.memory_space<vmem>>, vector<1x1x128xf32>
    tpu.vector_store %arg5[%c0_23, %c0_24, %c0_25], %24 {strides = array<i32>} : memref<1x18x128xf32, #tpu.memory_space<vmem>>, vector<1x1x128xf32>,
    %c0_26 = arith.constant 0 : index
    %c17 = arith.constant 17 : index
    %c0_27 = arith.constant 0 : index
    %26 = vector.load %arg5[%c0_26, %c17, %c0_27] : memref<1x18x128xf32, #tpu.memory_space<vmem>>, vector<1x1x128xf32>
    tpu.vector_store %arg5[%c0_26, %c17, %c0_27], %24 {strides = array<i32>} : memref<1x18x128xf32, #tpu.memory_space<vmem>>, vector<1x1x128xf32>,
    %27 = vector.shape_cast %23 : vector<16x128xf32> to vector<1x16x128xf32>
    %c0_28 = arith.constant 0 : index
    %c1_29 = arith.constant 1 : index
    %c0_30 = arith.constant 0 : index
    %28 = vector.load %arg5[%c0_28, %c1_29, %c0_30] : memref<1x18x128xf32, #tpu.memory_space<vmem>>, vector<1x16x128xf32>
    tpu.vector_store %arg5[%c0_28, %c1_29, %c0_30], %27 {strides = array<i32>} : memref<1x18x128xf32, #tpu.memory_space<vmem>>, vector<1x16x128xf32>,
    %c0_i32_31 = arith.constant 0 : i32
    %c0_i32_32 = arith.constant 0 : i32
    %c0_i32_33 = arith.constant 0 : i32
    %29 = tpu.memref_slice %arg5[%c0_i32_31, %c0_i32_32, %c0_i32_33] : memref<1x18x128xf32, #tpu.memory_space<vmem>> -> memref<1x18x128xf32, #tpu.memory_space<vmem>>
    %30 = tpu.memref_squeeze %29 : memref<1x18x128xf32, #tpu.memory_space<vmem>> -> memref<18x128xf32, #tpu.memory_space<vmem>>
    %c0_34 = arith.constant 0 : index
    %c0_35 = arith.constant 0 : index
    %31 = tpu.strided_load %30[%c0_34, %c0_35] {strides = array<i32: 2, 1>} : memref<18x128xf32, #tpu.memory_space<vmem>>, vector<8x128xf32>
    %c0_i32_36 = arith.constant 0 : i32
    %c0_i32_37 = arith.constant 0 : i32
    %c0_i32_38 = arith.constant 0 : i32
    %32 = tpu.memref_slice %arg5[%c0_i32_36, %c0_i32_37, %c0_i32_38] : memref<1x18x128xf32, #tpu.memory_space<vmem>> -> memref<1x18x128xf32, #tpu.memory_space<vmem>>
    %33 = tpu.memref_squeeze %32 : memref<1x18x128xf32, #tpu.memory_space<vmem>> -> memref<18x128xf32, #tpu.memory_space<vmem>>
    %c1_39 = arith.constant 1 : index
    %c0_40 = arith.constant 0 : index
    %34 = tpu.strided_load %33[%c1_39, %c0_40] {strides = array<i32: 2, 1>} : memref<18x128xf32, #tpu.memory_space<vmem>>, vector<8x128xf32>
    %c0_i32_41 = arith.constant 0 : i32
    %c0_i32_42 = arith.constant 0 : i32
    %c0_i32_43 = arith.constant 0 : i32
    %35 = tpu.memref_slice %arg5[%c0_i32_41, %c0_i32_42, %c0_i32_43] : memref<1x18x128xf32, #tpu.memory_space<vmem>> -> memref<1x18x128xf32, #tpu.memory_space<vmem>>
    %36 = tpu.memref_squeeze %35 : memref<1x18x128xf32, #tpu.memory_space<vmem>> -> memref<18x128xf32, #tpu.memory_space<vmem>>
    %c2_44 = arith.constant 2 : index
    %c0_45 = arith.constant 0 : index
    %37 = tpu.strided_load %36[%c2_44, %c0_45] {strides = array<i32: 2, 1>} : memref<18x128xf32, #tpu.memory_space<vmem>>, vector<8x128xf32>
    %c0_i32_46 = arith.constant 0 : i32
    %c0_i32_47 = arith.constant 0 : i32
    %c0_i32_48 = arith.constant 0 : i32
    %38 = tpu.memref_slice %arg5[%c0_i32_46, %c0_i32_47, %c0_i32_48] : memref<1x18x128xf32, #tpu.memory_space<vmem>> -> memref<1x18x128xf32, #tpu.memory_space<vmem>>
    %39 = tpu.memref_squeeze %38 : memref<1x18x128xf32, #tpu.memory_space<vmem>> -> memref<18x128xf32, #tpu.memory_space<vmem>>
    %c3_49 = arith.constant 3 : index
    %c0_50 = arith.constant 0 : index
    %40 = tpu.strided_load %39[%c3_49, %c0_50] {strides = array<i32: 2, 1>} : memref<18x128xf32, #tpu.memory_space<vmem>>, vector<8x128xf32>
    %41 = tpu.concatenate %31, %34, %37, %40 in 1 : vector<8x128xf32>, vector<8x128xf32>, vector<8x128xf32>, vector<8x128xf32> -> vector<8x512xf32>
    %c1_51 = arith.constant 1 : index
    %c0_52 = arith.constant 0 : index
    %c0_53 = arith.constant 0 : index
    %42 = vector.load %arg2[%c1_51, %c0_52, %c0_53] : memref<5x512x128xbf16, #tpu.memory_space<vmem>>, vector<1x512x128xbf16>
    %43 = vector.shape_cast %42 : vector<1x512x128xbf16> to vector<512x128xbf16>
    %c1_54 = arith.constant 1 : index
    %c0_55 = arith.constant 0 : index
    %c0_56 = arith.constant 0 : index
    %44 = vector.load %arg3[%c1_54, %c0_55, %c0_56] : memref<5x1x128xf32, #tpu.memory_space<vmem>>, vector<1x1x128xf32>
    %45 = vector.shape_cast %44 : vector<1x1x128xf32> to vector<1x128xf32>
    %46 = arith.truncf %41 : vector<8x512xf32> to vector<8x512xbf16>
    %cst_57 = arith.constant dense<0.000000e+00> : vector<8x128xf32>
    %47 = tpu.matmul %46, %43, %cst_57 {dimension_numbers = #tpu.dot_dimension_numbers<[1], [0], [0], [1], [0, 0, 1, 1], [], []>} : vector<8x512xbf16>, vector<512x128xbf16>, vector<8x128xf32> -> vector<8x128xf32>
    %48 = vector.broadcast %45 : vector<1x128xf32> to vector<8x128xf32>
    %49 = arith.addf %47, %48 : vector<8x128xf32>
    %cst_58 = arith.constant 2.000000e-01 : f32
    %50 = vector.broadcast %cst_58 : f32 to vector<8x128xf32>
    %51 = arith.mulf %50, %49 : vector<8x128xf32>
    %52 = arith.maximumf %49, %51 : vector<8x128xf32>
    %cst_59 = arith.constant 0.000000e+00 : f32
    %53 = vector.broadcast %cst_59 : f32 to vector<1x1x128xf32>
    %c0_60 = arith.constant 0 : index
    %c0_61 = arith.constant 0 : index
    %c0_62 = arith.constant 0 : index
    %54 = vector.load %arg6[%c0_60, %c0_61, %c0_62] : memref<1x10x128xf32, #tpu.memory_space<vmem>>, vector<1x1x128xf32>
    tpu.vector_store %arg6[%c0_60, %c0_61, %c0_62], %53 {strides = array<i32>} : memref<1x10x128xf32, #tpu.memory_space<vmem>>, vector<1x1x128xf32>,
    %c0_63 = arith.constant 0 : index
    %c9 = arith.constant 9 : index
    %c0_64 = arith.constant 0 : index
    %55 = vector.load %arg6[%c0_63, %c9, %c0_64] : memref<1x10x128xf32, #tpu.memory_space<vmem>>, vector<1x1x128xf32>
    tpu.vector_store %arg6[%c0_63, %c9, %c0_64], %53 {strides = array<i32>} : memref<1x10x128xf32, #tpu.memory_space<vmem>>, vector<1x1x128xf32>,
    %56 = vector.shape_cast %52 : vector<8x128xf32> to vector<1x8x128xf32>
    %c0_65 = arith.constant 0 : index
    %c1_66 = arith.constant 1 : index
    %c0_67 = arith.constant 0 : index
    %57 = vector.load %arg6[%c0_65, %c1_66, %c0_67] : memref<1x10x128xf32, #tpu.memory_space<vmem>>, vector<1x8x128xf32>
    tpu.vector_store %arg6[%c0_65, %c1_66, %c0_67], %56 {strides = array<i32>} : memref<1x10x128xf32, #tpu.memory_space<vmem>>, vector<1x8x128xf32>,
    %c0_i32_68 = arith.constant 0 : i32
    %c0_i32_69 = arith.constant 0 : i32
    %c0_i32_70 = arith.constant 0 : i32
    %58 = tpu.memref_slice %arg6[%c0_i32_68, %c0_i32_69, %c0_i32_70] : memref<1x10x128xf32, #tpu.memory_space<vmem>> -> memref<1x10x128xf32, #tpu.memory_space<vmem>>
    %59 = tpu.memref_squeeze %58 : memref<1x10x128xf32, #tpu.memory_space<vmem>> -> memref<10x128xf32, #tpu.memory_space<vmem>>
    %c0_71 = arith.constant 0 : index
    %c0_72 = arith.constant 0 : index
    %60 = tpu.strided_load %59[%c0_71, %c0_72] {strides = array<i32: 2, 1>} : memref<10x128xf32, #tpu.memory_space<vmem>>, vector<4x128xf32>
    %c0_i32_73 = arith.constant 0 : i32
    %c0_i32_74 = arith.constant 0 : i32
    %c0_i32_75 = arith.constant 0 : i32
    %61 = tpu.memref_slice %arg6[%c0_i32_73, %c0_i32_74, %c0_i32_75] : memref<1x10x128xf32, #tpu.memory_space<vmem>> -> memref<1x10x128xf32, #tpu.memory_space<vmem>>
    %62 = tpu.memref_squeeze %61 : memref<1x10x128xf32, #tpu.memory_space<vmem>> -> memref<10x128xf32, #tpu.memory_space<vmem>>
    %c1_76 = arith.constant 1 : index
    %c0_77 = arith.constant 0 : index
    %63 = tpu.strided_load %62[%c1_76, %c0_77] {strides = array<i32: 2, 1>} : memref<10x128xf32, #tpu.memory_space<vmem>>, vector<4x128xf32>
    %c0_i32_78 = arith.constant 0 : i32
    %c0_i32_79 = arith.constant 0 : i32
    %c0_i32_80 = arith.constant 0 : i32
    %64 = tpu.memref_slice %arg6[%c0_i32_78, %c0_i32_79, %c0_i32_80] : memref<1x10x128xf32, #tpu.memory_space<vmem>> -> memref<1x10x128xf32, #tpu.memory_space<vmem>>
    %65 = tpu.memref_squeeze %64 : memref<1x10x128xf32, #tpu.memory_space<vmem>> -> memref<10x128xf32, #tpu.memory_space<vmem>>
    %c2_81 = arith.constant 2 : index
    %c0_82 = arith.constant 0 : index
    %66 = tpu.strided_load %65[%c2_81, %c0_82] {strides = array<i32: 2, 1>} : memref<10x128xf32, #tpu.memory_space<vmem>>, vector<4x128xf32>
    %c0_i32_83 = arith.constant 0 : i32
    %c0_i32_84 = arith.constant 0 : i32
    %c0_i32_85 = arith.constant 0 : i32
    %67 = tpu.memref_slice %arg6[%c0_i32_83, %c0_i32_84, %c0_i32_85] : memref<1x10x128xf32, #tpu.memory_space<vmem>> -> memref<1x10x128xf32, #tpu.memory_space<vmem>>
    %68 = tpu.memref_squeeze %67 : memref<1x10x128xf32, #tpu.memory_space<vmem>> -> memref<10x128xf32, #tpu.memory_space<vmem>>
    %c3_86 = arith.constant 3 : index
    %c0_87 = arith.constant 0 : index
    %69 = tpu.strided_load %68[%c3_86, %c0_87] {strides = array<i32: 2, 1>} : memref<10x128xf32, #tpu.memory_space<vmem>>, vector<4x128xf32>
    %70 = tpu.concatenate %60, %63, %66, %69 in 1 : vector<4x128xf32>, vector<4x128xf32>, vector<4x128xf32>, vector<4x128xf32> -> vector<4x512xf32>
    %c2_88 = arith.constant 2 : index
    %c0_89 = arith.constant 0 : index
    %c0_90 = arith.constant 0 : index
    %71 = vector.load %arg2[%c2_88, %c0_89, %c0_90] : memref<5x512x128xbf16, #tpu.memory_space<vmem>>, vector<1x512x128xbf16>
    %72 = vector.shape_cast %71 : vector<1x512x128xbf16> to vector<512x128xbf16>
    %c2_91 = arith.constant 2 : index
    %c0_92 = arith.constant 0 : index
    %c0_93 = arith.constant 0 : index
    %73 = vector.load %arg3[%c2_91, %c0_92, %c0_93] : memref<5x1x128xf32, #tpu.memory_space<vmem>>, vector<1x1x128xf32>
    %74 = vector.shape_cast %73 : vector<1x1x128xf32> to vector<1x128xf32>
    %75 = arith.truncf %70 : vector<4x512xf32> to vector<4x512xbf16>
    %cst_94 = arith.constant dense<0.000000e+00> : vector<4x128xf32>
    %76 = tpu.matmul %75, %72, %cst_94 {dimension_numbers = #tpu.dot_dimension_numbers<[1], [0], [0], [1], [0, 0, 1, 1], [], []>} : vector<4x512xbf16>, vector<512x128xbf16>, vector<4x128xf32> -> vector<4x128xf32>
    %77 = vector.broadcast %74 : vector<1x128xf32> to vector<4x128xf32>
    %78 = arith.addf %76, %77 : vector<4x128xf32>
    %cst_95 = arith.constant 2.000000e-01 : f32
    %79 = vector.broadcast %cst_95 : f32 to vector<4x128xf32>
    %80 = arith.mulf %79, %78 : vector<4x128xf32>
    %81 = arith.maximumf %78, %80 : vector<4x128xf32>
    %cst_96 = arith.constant 0.000000e+00 : f32
    %82 = vector.broadcast %cst_96 : f32 to vector<1x1x128xf32>
    %c0_97 = arith.constant 0 : index
    %c0_98 = arith.constant 0 : index
    %c0_99 = arith.constant 0 : index
    %83 = vector.load %arg7[%c0_97, %c0_98, %c0_99] : memref<1x6x128xf32, #tpu.memory_space<vmem>>, vector<1x1x128xf32>
    tpu.vector_store %arg7[%c0_97, %c0_98, %c0_99], %82 {strides = array<i32>} : memref<1x6x128xf32, #tpu.memory_space<vmem>>, vector<1x1x128xf32>,
    %c0_100 = arith.constant 0 : index
    %c5 = arith.constant 5 : index
    %c0_101 = arith.constant 0 : index
    %84 = vector.load %arg7[%c0_100, %c5, %c0_101] : memref<1x6x128xf32, #tpu.memory_space<vmem>>, vector<1x1x128xf32>
    tpu.vector_store %arg7[%c0_100, %c5, %c0_101], %82 {strides = array<i32>} : memref<1x6x128xf32, #tpu.memory_space<vmem>>, vector<1x1x128xf32>,
    %85 = vector.shape_cast %81 : vector<4x128xf32> to vector<1x4x128xf32>
    %c0_102 = arith.constant 0 : index
    %c1_103 = arith.constant 1 : index
    %c0_104 = arith.constant 0 : index
    %86 = vector.load %arg7[%c0_102, %c1_103, %c0_104] : memref<1x6x128xf32, #tpu.memory_space<vmem>>, vector<1x4x128xf32>
    tpu.vector_store %arg7[%c0_102, %c1_103, %c0_104], %85 {strides = array<i32>} : memref<1x6x128xf32, #tpu.memory_space<vmem>>, vector<1x4x128xf32>,
    %c0_i32_105 = arith.constant 0 : i32
    %c0_i32_106 = arith.constant 0 : i32
    %c0_i32_107 = arith.constant 0 : i32
    %87 = tpu.memref_slice %arg7[%c0_i32_105, %c0_i32_106, %c0_i32_107] : memref<1x6x128xf32, #tpu.memory_space<vmem>> -> memref<1x6x128xf32, #tpu.memory_space<vmem>>
    %88 = tpu.memref_squeeze %87 : memref<1x6x128xf32, #tpu.memory_space<vmem>> -> memref<6x128xf32, #tpu.memory_space<vmem>>
    %c0_108 = arith.constant 0 : index
    %c0_109 = arith.constant 0 : index
    %89 = tpu.strided_load %88[%c0_108, %c0_109] {strides = array<i32: 2, 1>} : memref<6x128xf32, #tpu.memory_space<vmem>>, vector<2x128xf32>
    %c0_i32_110 = arith.constant 0 : i32
    %c0_i32_111 = arith.constant 0 : i32
    %c0_i32_112 = arith.constant 0 : i32
    %90 = tpu.memref_slice %arg7[%c0_i32_110, %c0_i32_111, %c0_i32_112] : memref<1x6x128xf32, #tpu.memory_space<vmem>> -> memref<1x6x128xf32, #tpu.memory_space<vmem>>
    %91 = tpu.memref_squeeze %90 : memref<1x6x128xf32, #tpu.memory_space<vmem>> -> memref<6x128xf32, #tpu.memory_space<vmem>>
    %c1_113 = arith.constant 1 : index
    %c0_114 = arith.constant 0 : index
    %92 = tpu.strided_load %91[%c1_113, %c0_114] {strides = array<i32: 2, 1>} : memref<6x128xf32, #tpu.memory_space<vmem>>, vector<2x128xf32>
    %c0_i32_115 = arith.constant 0 : i32
    %c0_i32_116 = arith.constant 0 : i32
    %c0_i32_117 = arith.constant 0 : i32
    %93 = tpu.memref_slice %arg7[%c0_i32_115, %c0_i32_116, %c0_i32_117] : memref<1x6x128xf32, #tpu.memory_space<vmem>> -> memref<1x6x128xf32, #tpu.memory_space<vmem>>
    %94 = tpu.memref_squeeze %93 : memref<1x6x128xf32, #tpu.memory_space<vmem>> -> memref<6x128xf32, #tpu.memory_space<vmem>>
    %c2_118 = arith.constant 2 : index
    %c0_119 = arith.constant 0 : index
    %95 = tpu.strided_load %94[%c2_118, %c0_119] {strides = array<i32: 2, 1>} : memref<6x128xf32, #tpu.memory_space<vmem>>, vector<2x128xf32>
    %c0_i32_120 = arith.constant 0 : i32
    %c0_i32_121 = arith.constant 0 : i32
    %c0_i32_122 = arith.constant 0 : i32
    %96 = tpu.memref_slice %arg7[%c0_i32_120, %c0_i32_121, %c0_i32_122] : memref<1x6x128xf32, #tpu.memory_space<vmem>> -> memref<1x6x128xf32, #tpu.memory_space<vmem>>
    %97 = tpu.memref_squeeze %96 : memref<1x6x128xf32, #tpu.memory_space<vmem>> -> memref<6x128xf32, #tpu.memory_space<vmem>>
    %c3_123 = arith.constant 3 : index
    %c0_124 = arith.constant 0 : index
    %98 = tpu.strided_load %97[%c3_123, %c0_124] {strides = array<i32: 2, 1>} : memref<6x128xf32, #tpu.memory_space<vmem>>, vector<2x128xf32>
    %99 = tpu.concatenate %89, %92, %95, %98 in 1 : vector<2x128xf32>, vector<2x128xf32>, vector<2x128xf32>, vector<2x128xf32> -> vector<2x512xf32>
    %c3_125 = arith.constant 3 : index
    %c0_126 = arith.constant 0 : index
    %c0_127 = arith.constant 0 : index
    %100 = vector.load %arg2[%c3_125, %c0_126, %c0_127] : memref<5x512x128xbf16, #tpu.memory_space<vmem>>, vector<1x512x128xbf16>
    %101 = vector.shape_cast %100 : vector<1x512x128xbf16> to vector<512x128xbf16>
    %c3_128 = arith.constant 3 : index
    %c0_129 = arith.constant 0 : index
    %c0_130 = arith.constant 0 : index
    %102 = vector.load %arg3[%c3_128, %c0_129, %c0_130] : memref<5x1x128xf32, #tpu.memory_space<vmem>>, vector<1x1x128xf32>
    %103 = vector.shape_cast %102 : vector<1x1x128xf32> to vector<1x128xf32>
    %104 = arith.truncf %99 : vector<2x512xf32> to vector<2x512xbf16>
    %cst_131 = arith.constant dense<0.000000e+00> : vector<2x128xf32>
    %105 = tpu.matmul %104, %101, %cst_131 {dimension_numbers = #tpu.dot_dimension_numbers<[1], [0], [0], [1], [0, 0, 1, 1], [], []>} : vector<2x512xbf16>, vector<512x128xbf16>, vector<2x128xf32> -> vector<2x128xf32>
    %106 = vector.broadcast %103 : vector<1x128xf32> to vector<2x128xf32>
    %107 = arith.addf %105, %106 : vector<2x128xf32>
    %cst_132 = arith.constant 2.000000e-01 : f32
    %108 = vector.broadcast %cst_132 : f32 to vector<2x128xf32>
    %109 = arith.mulf %108, %107 : vector<2x128xf32>
    %110 = arith.maximumf %107, %109 : vector<2x128xf32>
    %cst_133 = arith.constant 0.000000e+00 : f32
    %111 = vector.broadcast %cst_133 : f32 to vector<1x1x128xf32>
    %c0_134 = arith.constant 0 : index
    %c0_135 = arith.constant 0 : index
    %c0_136 = arith.constant 0 : index
    %112 = vector.load %arg8[%c0_134, %c0_135, %c0_136] : memref<1x4x128xf32, #tpu.memory_space<vmem>>, vector<1x1x128xf32>
    tpu.vector_store %arg8[%c0_134, %c0_135, %c0_136], %111 {strides = array<i32>} : memref<1x4x128xf32, #tpu.memory_space<vmem>>, vector<1x1x128xf32>,
    %c0_137 = arith.constant 0 : index
    %c3_138 = arith.constant 3 : index
    %c0_139 = arith.constant 0 : index
    %113 = vector.load %arg8[%c0_137, %c3_138, %c0_139] : memref<1x4x128xf32, #tpu.memory_space<vmem>>, vector<1x1x128xf32>
    tpu.vector_store %arg8[%c0_137, %c3_138, %c0_139], %111 {strides = array<i32>} : memref<1x4x128xf32, #tpu.memory_space<vmem>>, vector<1x1x128xf32>,
    %114 = vector.shape_cast %110 : vector<2x128xf32> to vector<1x2x128xf32>
    %c0_140 = arith.constant 0 : index
    %c1_141 = arith.constant 1 : index
    %c0_142 = arith.constant 0 : index
    %115 = vector.load %arg8[%c0_140, %c1_141, %c0_142] : memref<1x4x128xf32, #tpu.memory_space<vmem>>, vector<1x2x128xf32>
    tpu.vector_store %arg8[%c0_140, %c1_141, %c0_142], %114 {strides = array<i32>} : memref<1x4x128xf32, #tpu.memory_space<vmem>>, vector<1x2x128xf32>,
    %c0_i32_143 = arith.constant 0 : i32
    %c0_i32_144 = arith.constant 0 : i32
    %c0_i32_145 = arith.constant 0 : i32
    %116 = tpu.memref_slice %arg8[%c0_i32_143, %c0_i32_144, %c0_i32_145] : memref<1x4x128xf32, #tpu.memory_space<vmem>> -> memref<1x4x128xf32, #tpu.memory_space<vmem>>
    %117 = tpu.memref_squeeze %116 : memref<1x4x128xf32, #tpu.memory_space<vmem>> -> memref<4x128xf32, #tpu.memory_space<vmem>>
    %c0_146 = arith.constant 0 : index
    %c0_147 = arith.constant 0 : index
    %118 = vector.load %117[%c0_146, %c0_147] : memref<4x128xf32, #tpu.memory_space<vmem>>, vector<1x128xf32>
    %c0_i32_148 = arith.constant 0 : i32
    %c0_i32_149 = arith.constant 0 : i32
    %c0_i32_150 = arith.constant 0 : i32
    %119 = tpu.memref_slice %arg8[%c0_i32_148, %c0_i32_149, %c0_i32_150] : memref<1x4x128xf32, #tpu.memory_space<vmem>> -> memref<1x4x128xf32, #tpu.memory_space<vmem>>
    %120 = tpu.memref_squeeze %119 : memref<1x4x128xf32, #tpu.memory_space<vmem>> -> memref<4x128xf32, #tpu.memory_space<vmem>>
    %c1_151 = arith.constant 1 : index
    %c0_152 = arith.constant 0 : index
    %121 = vector.load %120[%c1_151, %c0_152] : memref<4x128xf32, #tpu.memory_space<vmem>>, vector<1x128xf32>
    %c0_i32_153 = arith.constant 0 : i32
    %c0_i32_154 = arith.constant 0 : i32
    %c0_i32_155 = arith.constant 0 : i32
    %122 = tpu.memref_slice %arg8[%c0_i32_153, %c0_i32_154, %c0_i32_155] : memref<1x4x128xf32, #tpu.memory_space<vmem>> -> memref<1x4x128xf32, #tpu.memory_space<vmem>>
    %123 = tpu.memref_squeeze %122 : memref<1x4x128xf32, #tpu.memory_space<vmem>> -> memref<4x128xf32, #tpu.memory_space<vmem>>
    %c2_156 = arith.constant 2 : index
    %c0_157 = arith.constant 0 : index
    %124 = vector.load %123[%c2_156, %c0_157] : memref<4x128xf32, #tpu.memory_space<vmem>>, vector<1x128xf32>
    %c0_i32_158 = arith.constant 0 : i32
    %c0_i32_159 = arith.constant 0 : i32
    %c0_i32_160 = arith.constant 0 : i32
    %125 = tpu.memref_slice %arg8[%c0_i32_158, %c0_i32_159, %c0_i32_160] : memref<1x4x128xf32, #tpu.memory_space<vmem>> -> memref<1x4x128xf32, #tpu.memory_space<vmem>>
    %126 = tpu.memref_squeeze %125 : memref<1x4x128xf32, #tpu.memory_space<vmem>> -> memref<4x128xf32, #tpu.memory_space<vmem>>
    %c3_161 = arith.constant 3 : index
    %c0_162 = arith.constant 0 : index
    %127 = vector.load %126[%c3_161, %c0_162] : memref<4x128xf32, #tpu.memory_space<vmem>>, vector<1x128xf32>
    %128 = tpu.concatenate %118, %121, %124, %127 in 1 : vector<1x128xf32>, vector<1x128xf32>, vector<1x128xf32>, vector<1x128xf32> -> vector<1x512xf32>
    %c4 = arith.constant 4 : index
    %c0_163 = arith.constant 0 : index
    %c0_164 = arith.constant 0 : index
    %129 = vector.load %arg2[%c4, %c0_163, %c0_164] : memref<5x512x128xbf16, #tpu.memory_space<vmem>>, vector<1x512x128xbf16>
    %130 = vector.shape_cast %129 : vector<1x512x128xbf16> to vector<512x128xbf16>
    %c4_165 = arith.constant 4 : index
    %c0_166 = arith.constant 0 : index
    %c0_167 = arith.constant 0 : index
    %131 = vector.load %arg3[%c4_165, %c0_166, %c0_167] : memref<5x1x128xf32, #tpu.memory_space<vmem>>, vector<1x1x128xf32>
    %132 = vector.shape_cast %131 : vector<1x1x128xf32> to vector<1x128xf32>
    %133 = arith.truncf %128 : vector<1x512xf32> to vector<1x512xbf16>
    %cst_168 = arith.constant dense<0.000000e+00> : vector<1x128xf32>
    %134 = tpu.matmul %133, %130, %cst_168 {dimension_numbers = #tpu.dot_dimension_numbers<[1], [0], [0], [1], [0, 0, 1, 1], [], []>} : vector<1x512xbf16>, vector<512x128xbf16>, vector<1x128xf32> -> vector<1x128xf32>
    %135 = arith.addf %134, %132 : vector<1x128xf32>
    %136 = vector.shape_cast %135 : vector<1x128xf32> to vector<1x1x128xf32>
    %137 = arith.truncf %136 : vector<1x1x128xf32> to vector<1x1x128xbf16>
    %c0_169 = arith.constant 0 : index
    %c0_170 = arith.constant 0 : index
    %c0_171 = arith.constant 0 : index
    %138 = vector.load %arg4[%c0_169, %c0_170, %c0_171] : memref<1x1x128xbf16, #tpu.memory_space<vmem>>, vector<1x1x128xbf16>
    tpu.vector_store %arg4[%c0_169, %c0_170, %c0_171], %137 {strides = array<i32>} : memref<1x1x128xbf16, #tpu.memory_space<vmem>>, vector<1x1x128xbf16>,
    return
  }
  func.func @transform_0(%arg0: i32) -> (i32, i32, i32) {
    %c0_i32 = arith.constant 0 : i32
    %c0_i32_0 = arith.constant 0 : i32
    %c0_i32_1 = arith.constant 0 : i32
    return %arg0, %c0_i32, %c0_i32_0 : i32, i32, i32
  }
  func.func @transform_1(%arg0: i32) -> (i32, i32, i32) {
    %c0_i32 = arith.constant 0 : i32
    %c0_i32_0 = arith.constant 0 : i32
    %c0_i32_1 = arith.constant 0 : i32
    %c0_i32_2 = arith.constant 0 : i32
    return %c0_i32, %c0_i32_0, %c0_i32_1 : i32, i32, i32
  }
  func.func @transform_2(%arg0: i32) -> (i32, i32, i32) {
    %c0_i32 = arith.constant 0 : i32
    %c0_i32_0 = arith.constant 0 : i32
    %c0_i32_1 = arith.constant 0 : i32
    %c0_i32_2 = arith.constant 0 : i32
    return %c0_i32, %c0_i32_0, %c0_i32_1 : i32, i32, i32
  }
  func.func @transform_3(%arg0: i32) -> (i32, i32, i32) {
    %c0_i32 = arith.constant 0 : i32
    %c0_i32_0 = arith.constant 0 : i32
    %c0_i32_1 = arith.constant 0 : i32
    return %arg0, %c0_i32, %c0_i32_0 : i32, i32, i32
  }
}

</mosaic_0001>

<llo_original>
// kernel: tpu_custom_call.1
$region0: #{tpu_custom_call.1}
  #allocation0 [shape = 'u32[]', space=smem, size = 0x4, offset = 0x4, fixed_abs, tag = 'smem constant byte address 0x4 - core index']
  #allocation1 [shape = 'u32[144,128]{1,0:T(1,128)}', space=vmem, size = 0x12000, scoped, tag = 'internal scratch']
  #allocation2 [shape = 'f32[1,18,128]{2,1,0:T(8,128)}', space=vmem, size = 0x3000, scoped, tag = 'scratch operand']
  #allocation3 [shape = 'f32[1,10,128]{2,1,0:T(8,128)}', space=vmem, size = 0x2000, scoped, tag = 'scratch operand']
  #allocation4 [shape = 'f32[1,6,128]{2,1,0:T(8,128)}', space=vmem, size = 0x1000, scoped, tag = 'scratch operand']
  #allocation5 [shape = 'f32[1,4,128]{2,1,0:T(4,128)}', space=vmem, size = 0x800, scoped, tag = 'scratch operand']
  %s0 = inlined_call_operand.vmem [shape: f32[2,34,128], index: 0, kind: input, shape index: {}]
  %s1 = inlined_call_operand.hbm [shape: bf16[5,512,128], index: 1, kind: input, shape index: {}]
  %s2 = inlined_call_operand.vmem [shape: f32[5,1,128], index: 2, kind: input, shape index: {}]
  %s3 = inlined_call_operand.vmem [shape: bf16[2,1,128], index: 3, kind: output, shape index: {}]
  %s4 = sld [smem:[#allocation0]]
  $region49: #{tpu_custom_call.1} parent=0
    _
  %s6 = ssub.s32 1, %s4
  %s7 = scalar_select 0, %s6, %s4
  $region1: #{tpu_custom_call.1} parent=0
    #allocation6 [shape = 'u8[655360]{0}', space=vmem, size = 0xa0000, scoped, tag = 'input window, operand 1, single buffered']
    #allocation7 [shape = 's32[2]{0}', space=sflag, size = 0x8, scoped, tag = 'scoped memory for tpu_custom_call.1']
    %8 = vsyncpa [#allocation7], 0
    loop: start=0, step=1, limit=4
    $region2: #{tpu_custom_call.1} parent=1 // loop_pre_header
      _
    $region3: #{tpu_custom_call.1} parent=1 // loop_header
      %s10 = sphi 0, %s14
      %p11 = scmp.ge.s32.totalorder %s10, 4
      %s20 = sphi 0, %s22
      %s23 = sphi 0, %s20
      %s24 = sphi 0, %s23
      %s40 = sphi 0, %s24
      %s44 = sphi 0, %s44
      %s46 = sphi 0, %s44
      %s47 = sphi 0, %s46
      %s61 = sphi 0, %s47
      %s65 = sphi 0, %s65
      %s67 = sphi 0, %s65
      %s68 = sphi 0, %s67
      %s82 = sphi 0, %s68
      %s88 = sphi 0, %s90
      %s91 = sphi 0, %s88
      %s92 = sphi 0, %s91
      %s108 = sphi 0, %s92
    $region4: #{tpu_custom_call.1} parent=1 // loop_header_branch
      %13 = sbr.rel (%p11) target = $region8
    $region5: #{tpu_custom_call.1} parent=1 // loop_body
      %s15 = ssub.s32 %s10, 1
      %s16 = ssub.s32 %s10, 2
      %s17 = sadd.s32 %s10, 1
      %s18 = ssub.s32 %s10, %s17
      %p19 = scmp.eq.s32.totalorder %s18, 0
      %s21 = sadd.s32 %s20, 1
      %s22 = scalar_select %p19, %s20, %s21
      %p25 = pneg %p19
      %p26 = scmp.eq.s32.totalorder %s10, 1
      %p27 = por %p25, %p26
      %p28 = scmp.ne.s32.totalorder %s20, %s23
      %p29 = scmp.eq.s32.totalorder %s10, 0
      %p30 = por %p28, %p29
      %p31 = scmp.ne.s32.totalorder %s20, %s23
      %p32 = scmp.eq.s32.totalorder %s15, 1
      %p33 = por %p31, %p32
      %p34 = scmp.ne.s32.totalorder %s23, %s24
      %p35 = scmp.eq.s32.totalorder %s15, 0
      %p36 = por %p34, %p35
      %p37 = scmp.ne.s32.totalorder %s23, %s24
      %p38 = scmp.eq.s32.totalorder %s16, 1
      %p39 = por %p37, %p38
      %p41 = scmp.ne.s32.totalorder %s24, %s40
      %p42 = scmp.eq.s32.totalorder %s16, 0
      %p43 = por %p41, %p42
      %s45 = sadd.s32 %s44, 1
      %p48 = scmp.eq.s32.totalorder %s10, 1
      %p49 = scmp.ne.s32.totalorder %s44, %s46
      %p50 = scmp.eq.s32.totalorder %s10, 0
      %p51 = por %p49, %p50
      %p52 = scmp.ne.s32.totalorder %s44, %s46
      %p53 = scmp.eq.s32.totalorder %s15, 1
      %p54 = por %p52, %p53
      %p55 = scmp.ne.s32.totalorder %s46, %s47
      %p56 = scmp.eq.s32.totalorder %s15, 0
      %p57 = por %p55, %p56
      %p58 = scmp.ne.s32.totalorder %s46, %s47
      %p59 = scmp.eq.s32.totalorder %s16, 1
      %p60 = por %p58, %p59
      %p62 = scmp.ne.s32.totalorder %s47, %s61
      %p63 = scmp.eq.s32.totalorder %s16, 0
      %p64 = por %p62, %p63
      %s66 = sadd.s32 %s65, 1
      %p69 = scmp.eq.s32.totalorder %s10, 1
      %p70 = scmp.ne.s32.totalorder %s65, %s67
      %p71 = scmp.eq.s32.totalorder %s10, 0
      %p72 = por %p70, %p71
      %p73 = scmp.ne.s32.totalorder %s65, %s67
      %p74 = scmp.eq.s32.totalorder %s15, 1
      %p75 = por %p73, %p74
      %p76 = scmp.ne.s32.totalorder %s67, %s68
      %p77 = scmp.eq.s32.totalorder %s15, 0
      %p78 = por %p76, %p77
      %p79 = scmp.ne.s32.totalorder %s67, %s68
      %p80 = scmp.eq.s32.totalorder %s16, 1
      %p81 = por %p79, %p80
      %p83 = scmp.ne.s32.totalorder %s68, %s82
      %p84 = scmp.eq.s32.totalorder %s16, 0
      %p85 = por %p83, %p84
      %s86 = ssub.s32 %s10, %s17
      %p87 = scmp.eq.s32.totalorder %s86, 0
      %s89 = sadd.s32 %s88, 1
      %s90 = scalar_select %p87, %s88, %s89
      %p93 = pneg %p87
      %p94 = scmp.eq.s32.totalorder %s10, 1
      %p95 = por %p93, %p94
      %p96 = scmp.ne.s32.totalorder %s88, %s91
      %p97 = scmp.eq.s32.totalorder %s10, 0
      %p98 = por %p96, %p97
      %p99 = scmp.ne.s32.totalorder %s88, %s91
      %p100 = scmp.eq.s32.totalorder %s15, 1
      %p101 = por %p99, %p100
      %p102 = scmp.ne.s32.totalorder %s91, %s92
      %p103 = scmp.eq.s32.totalorder %s15, 0
      %p104 = por %p102, %p103
      %p105 = scmp.ne.s32.totalorder %s91, %s92
      %p106 = scmp.eq.s32.totalorder %s16, 1
      %p107 = por %p105, %p106
      %p109 = scmp.ne.s32.totalorder %s92, %s108
      %p110 = scmp.eq.s32.totalorder %s16, 0
      %p111 = por %p109, %p110
      %p112 = scmp.le.s32.totalorder 1, %s10
      %p113 = scmp.lt.s32.totalorder %s10, 3
      %p114 = pnand %p112, %p113
      %p115 = pneg %p114
      // Predicated region
      $region9: #{tpu_custom_call.1} parent=5 // pred_check
        _
      $region10: #{tpu_custom_call.1} parent=5 // pred_check_branch
        %117 = sbr.rel (%p114) target = $region12
      $region11: #{tpu_custom_call.1} parent=5 // pred_region
        %s118 = ssub.s32 %s10, 1
        // Predicated region
        $region13: #{tpu_custom_call.1} parent=11 // pred_check
          %p119 = pneg %p57
        $region14: #{tpu_custom_call.1} parent=11 // pred_check_branch
          %121 = sbr.rel (%p119) target = $region16
        $region15: #{tpu_custom_call.1} parent=11 // pred_region
          %s123 = ssub.s32 20480, 20480
          %124 = vsyncadd [#allocation7], %s123
          %s125 = sshll.u32 [#allocation6], 4
          %s126 = int_to_ptr.vmem [resolvable:$true] %s125
          %131 = dma.hbm_to_vmem [thread:$0]  %s1, 20480, %s126, [#allocation7], 64, 64, 4
        $region16: #{tpu_custom_call.1} parent=11 // pred_fallthru
          _
        // Predicated region
        $region17: #{tpu_custom_call.1} parent=11 // pred_check
          %p132 = pneg %p78
        $region18: #{tpu_custom_call.1} parent=11 // pred_check_branch
          %134 = sbr.rel (%p132) target = $region20
        $region19: #{tpu_custom_call.1} parent=11 // pred_region
          _
        $region20: #{tpu_custom_call.1} parent=11 // pred_fallthru
          _
      $region12: #{tpu_custom_call.1} parent=5 // pred_fallthru
        _
      %p135 = scmp.lt.s32.totalorder %s10, 2
      // Predicated region
      $region21: #{tpu_custom_call.1} parent=5 // pred_check
        %p136 = pneg %p135
      $region22: #{tpu_custom_call.1} parent=5 // pred_check_branch
        %138 = sbr.rel (%p136) target = $region24
      $region23: #{tpu_custom_call.1} parent=5 // pred_region
        // Predicated region
        $region25: #{tpu_custom_call.1} parent=23 // pred_check
          %p139 = pneg %p30
        $region26: #{tpu_custom_call.1} parent=23 // pred_check_branch
          %141 = sbr.rel (%p139) target = $region28
        $region27: #{tpu_custom_call.1} parent=23 // pred_region
          %p142 = scmp.lt.s32.totalorder %s10, 1
          %s143 = scalar_select %p142, %s10, 1
          %s144 = smul.addr %s143, 5
          %s145 = smul.addr %s144, 8
          %s146 = scalar_lea.vmem %s0, %s145
        $region28: #{tpu_custom_call.1} parent=23 // pred_fallthru
          _
      $region24: #{tpu_custom_call.1} parent=5 // pred_fallthru
        _
      %p147 = scmp.le.s32.totalorder 1, %s10
      %p148 = scmp.lt.s32.totalorder %s10, 3
      %p149 = pnand %p147, %p148
      %p150 = pneg %p149
      // Predicated region
      $region29: #{tpu_custom_call.1} parent=5 // pred_check
        _
      $region30: #{tpu_custom_call.1} parent=5 // pred_check_branch
        %152 = sbr.rel (%p149) target = $region32
      $region31: #{tpu_custom_call.1} parent=5 // pred_region
        %s153 = ssub.s32 %s10, 1
        // Predicated region
        $region33: #{tpu_custom_call.1} parent=31 // pred_check
          %p154 = pneg %p57
        $region34: #{tpu_custom_call.1} parent=31 // pred_check_branch
          %156 = sbr.rel (%p154) target = $region36
        $region35: #{tpu_custom_call.1} parent=31 // pred_region
          %157 = dma.done [#allocation7], 20480
        $region36: #{tpu_custom_call.1} parent=31 // pred_fallthru
          _
        %p158 = scmp.lt.s32.totalorder %s15, 1
        %s159 = scalar_select %p158, %s15, 1
        %s160 = smul.addr %s159, 5
        %s161 = smul.addr %s160, 8
        %s162 = scalar_lea.vmem %s0, %s161
        %p163 = pneg %p36
        %p164 = pneg %p33
        %p165 = pneg %p57
        %p166 = pneg %p54
        %p167 = pneg %p78
        %p168 = pneg %p75
        %p169 = pneg %p104
        %p170 = pneg %p101
        %p171 = scmp.lt.s32.totalorder %s15, 1
        %s172 = scalar_select %p171, %s15, 1
        %s173 = scalar_lea.vmem %s3, %s172
        %p174 = scmp.lt.s32.totalorder %s15, 1
        %s175 = scalar_select %p174, %s15, 1
        %s176 = smul.addr %s175, 5
        %s177 = smul.addr %s176, 8
        %s178 = scalar_lea.vmem %s0, %s177
        %p179 = scmp.lt.s32.totalorder %s15, 1
        %s180 = scalar_select %p179, %s15, 1
        %s181 = scalar_lea.vmem %s3, %s180
        %v183 = vld [vmem:[%s178] ss:$2 sm:$0xff]
        %s184 = scalar_lea.vmem %s178, 16
        %v185 = vld [vmem:[%s184] ss:$2 sm:$0xff]
        %s186 = scalar_lea.vmem %s178, 1
        %v187 = vld [vmem:[%s186] ss:$2 sm:$0xff]
        %s188 = scalar_lea.vmem %s178, 17
        %v189 = vld [vmem:[%s188] ss:$2 sm:$0xff]
        %s190 = scalar_lea.vmem %s178, 2
        %v191 = vld [vmem:[%s190] ss:$2 sm:$0xff]
        %s192 = scalar_lea.vmem %s178, 18
        %v193 = vld [vmem:[%s192] ss:$2 sm:$0xff]
        %s194 = scalar_lea.vmem %s178, 3
        %v195 = vld [vmem:[%s194] ss:$2 sm:$0xff]
        %s196 = scalar_lea.vmem %s178, 19
        %v197 = vld [vmem:[%s196] ss:$2 sm:$0xff]
        %v198 = vld [vmem:[#allocation6] sm:$0xf]
        %v199 = vld [vmem:[#allocation6 + $0x4] sm:$0xf]
        %v200 = vld [vmem:[#allocation6 + $0x8] sm:$0xf]
        %v201 = vld [vmem:[#allocation6 + $0xc] sm:$0xf]
        %v202 = vld [vmem:[#allocation6 + $0x10] sm:$0xf]
        %v203 = vld [vmem:[#allocation6 + $0x14] sm:$0xf]
        %v204 = vld [vmem:[#allocation6 + $0x18] sm:$0xf]
        %v205 = vld [vmem:[#allocation6 + $0x1c] sm:$0xf]
        %v206 = vld [vmem:[#allocation6 + $0x20] sm:$0xf]
        %v207 = vld [vmem:[#allocation6 + $0x24] sm:$0xf]
        %v208 = vld [vmem:[#allocation6 + $0x28] sm:$0xf]
        %v209 = vld [vmem:[#allocation6 + $0x2c] sm:$0xf]
        %v210 = vld [vmem:[#allocation6 + $0x30] sm:$0xf]
        %v211 = vld [vmem:[#allocation6 + $0x34] sm:$0xf]
        %v212 = vld [vmem:[#allocation6 + $0x38] sm:$0xf]
        %v213 = vld [vmem:[#allocation6 + $0x3c] sm:$0xf]
        %v214 = vld [vmem:[#allocation6 + $0x40] sm:$0xf]
        %v215 = vld [vmem:[#allocation6 + $0x44] sm:$0xf]
        %v216 = vld [vmem:[#allocation6 + $0x48] sm:$0xf]
        %v217 = vld [vmem:[#allocation6 + $0x4c] sm:$0xf]
        %v218 = vld [vmem:[#allocation6 + $0x50] sm:$0xf]
        %v219 = vld [vmem:[#allocation6 + $0x54] sm:$0xf]
        %v220 = vld [vmem:[#allocation6 + $0x58] sm:$0xf]
        %v221 = vld [vmem:[#allocation6 + $0x5c] sm:$0xf]
        %v222 = vld [vmem:[#allocation6 + $0x60] sm:$0xf]
        %v223 = vld [vmem:[#allocation6 + $0x64] sm:$0xf]
        %v224 = vld [vmem:[#allocation6 + $0x68] sm:$0xf]
        %v225 = vld [vmem:[#allocation6 + $0x6c] sm:$0xf]
        %v226 = vld [vmem:[#allocation6 + $0x70] sm:$0xf]
        %v227 = vld [vmem:[#allocation6 + $0x74] sm:$0xf]
        %v228 = vld [vmem:[#allocation6 + $0x78] sm:$0xf]
        %v229 = vld [vmem:[#allocation6 + $0x7c] sm:$0xf]
        %v230 = vld [vmem:[#allocation6 + $0x80] sm:$0xf]
        %v231 = vld [vmem:[#allocation6 + $0x84] sm:$0xf]
        %v232 = vld [vmem:[#allocation6 + $0x88] sm:$0xf]
        %v233 = vld [vmem:[#allocation6 + $0x8c] sm:$0xf]
        %v234 = vld [vmem:[#allocation6 + $0x90] sm:$0xf]
        %v235 = vld [vmem:[#allocation6 + $0x94] sm:$0xf]
        %v236 = vld [vmem:[#allocation6 + $0x98] sm:$0xf]
        %v237 = vld [vmem:[#allocation6 + $0x9c] sm:$0xf]
        %v238 = vld [vmem:[#allocation6 + $0xa0] sm:$0xf]
        %v239 = vld [vmem:[#allocation6 + $0xa4] sm:$0xf]
        %v240 = vld [vmem:[#allocation6 + $0xa8] sm:$0xf]
        %v241 = vld [vmem:[#allocation6 + $0xac] sm:$0xf]
        %v242 = vld [vmem:[#allocation6 + $0xb0] sm:$0xf]
        %v243 = vld [vmem:[#allocation6 + $0xb4] sm:$0xf]
        %v244 = vld [vmem:[#allocation6 + $0xb8] sm:$0xf]
        %v245 = vld [vmem:[#allocation6 + $0xbc] sm:$0xf]
        %v246 = vld [vmem:[#allocation6 + $0xc0] sm:$0xf]
        %v247 = vld [vmem:[#allocation6 + $0xc4] sm:$0xf]
        %v248 = vld [vmem:[#allocation6 + $0xc8] sm:$0xf]
        %v249 = vld [vmem:[#allocation6 + $0xcc] sm:$0xf]
        %v250 = vld [vmem:[#allocation6 + $0xd0] sm:$0xf]
        %v251 = vld [vmem:[#allocation6 + $0xd4] sm:$0xf]
        %v252 = vld [vmem:[#allocation6 + $0xd8] sm:$0xf]
        %v253 = vld [vmem:[#allocation6 + $0xdc] sm:$0xf]
        %v254 = vld [vmem:[#allocation6 + $0xe0] sm:$0xf]
        %v255 = vld [vmem:[#allocation6 + $0xe4] sm:$0xf]
        %v256 = vld [vmem:[#allocation6 + $0xe8] sm:$0xf]
        %v257 = vld [vmem:[#allocation6 + $0xec] sm:$0xf]
        %v258 = vld [vmem:[#allocation6 + $0xf0] sm:$0xf]
        %v259 = vld [vmem:[#allocation6 + $0xf4] sm:$0xf]
        %v260 = vld [vmem:[#allocation6 + $0xf8] sm:$0xf]
        %v261 = vld [vmem:[#allocation6 + $0xfc] sm:$0xf]
        %v262 = vld [vmem:[%s2] sm:$0x1]
        %v263 = vpack.c.bf16 %v185, %v183
        %v264 = vpack.c.bf16 %v189, %v187
        %v265 = vpack.c.bf16 %v193, %v191
        %v266 = vpack.c.bf16 %v197, %v195
        %v268 = vlaneseq
        %v269 = vshrl.u32 %v268, 7
        %v270 = vsub.s32 0, %v269
        %v271 = vrot.slane %v262, %v270
        %v337 = vunpack.c.l.b16 %v198
        %v338 = vunpack.c.l.b16 %v199
        %v339 = vunpack.c.l.b16 %v200
        %v340 = vunpack.c.l.b16 %v201
        %v341 = vunpack.c.l.b16 %v202
        %v342 = vunpack.c.l.b16 %v203
        %v343 = vunpack.c.l.b16 %v204
        %v344 = vunpack.c.l.b16 %v205
        %v345 = vunpack.c.l.b16 %v206
        %v346 = vunpack.c.l.b16 %v207
        %v347 = vunpack.c.l.b16 %v208
        %v348 = vunpack.c.l.b16 %v209
        %v349 = vunpack.c.l.b16 %v210
        %v350 = vunpack.c.l.b16 %v211
        %v351 = vunpack.c.l.b16 %v212
        %v352 = vunpack.c.l.b16 %v213
        %v353 = vunpack.c.l.b16 %v214
        %v354 = vunpack.c.l.b16 %v215
        %v355 = vunpack.c.l.b16 %v216
        %v356 = vunpack.c.l.b16 %v217
        %v357 = vunpack.c.l.b16 %v218
        %v358 = vunpack.c.l.b16 %v219
        %v359 = vunpack.c.l.b16 %v220
        %v360 = vunpack.c.l.b16 %v221
        %v361 = vunpack.c.l.b16 %v222
        %v362 = vunpack.c.l.b16 %v223
        %v363 = vunpack.c.l.b16 %v224
        %v364 = vunpack.c.l.b16 %v225
        %v365 = vunpack.c.l.b16 %v226
        %v366 = vunpack.c.l.b16 %v227
        %v367 = vunpack.c.l.b16 %v228
        %v368 = vunpack.c.l.b16 %v229
        %v369 = vunpack.c.l.b16 %v230
        %v370 = vunpack.c.l.b16 %v231
        %v371 = vunpack.c.l.b16 %v232
        %v372 = vunpack.c.l.b16 %v233
        %v373 = vunpack.c.l.b16 %v234
        %v374 = vunpack.c.l.b16 %v235
        %v375 = vunpack.c.l.b16 %v236
        %v376 = vunpack.c.l.b16 %v237
        %v377 = vunpack.c.l.b16 %v238
        %v378 = vunpack.c.l.b16 %v239
        %v379 = vunpack.c.l.b16 %v240
        %v380 = vunpack.c.l.b16 %v241
        %v381 = vunpack.c.l.b16 %v242
        %v382 = vunpack.c.l.b16 %v243
        %v383 = vunpack.c.l.b16 %v244
        %v384 = vunpack.c.l.b16 %v245
        %v385 = vunpack.c.l.b16 %v246
        %v386 = vunpack.c.l.b16 %v247
        %v387 = vunpack.c.l.b16 %v248
        %v388 = vunpack.c.l.b16 %v249
        %v389 = vunpack.c.l.b16 %v250
        %v390 = vunpack.c.l.b16 %v251
        %v391 = vunpack.c.l.b16 %v252
        %v392 = vunpack.c.l.b16 %v253
        %v393 = vunpack.c.l.b16 %v254
        %v394 = vunpack.c.l.b16 %v255
        %v395 = vunpack.c.l.b16 %v256
        %v396 = vunpack.c.l.b16 %v257
        %v397 = vunpack.c.l.b16 %v258
        %v398 = vunpack.c.l.b16 %v259
        %v399 = vunpack.c.l.b16 %v260
        %v400 = vunpack.c.l.b16 %v261
        %v401 = vpack.c.b16 %v338, %v337
        %v402 = vpack.c.b16 %v340, %v339
        %v403 = vpack.c.b16 %v342, %v341
        %v404 = vpack.c.b16 %v344, %v343
        %v405 = vpack.c.b16 %v346, %v345
        %v406 = vpack.c.b16 %v348, %v347
        %v407 = vpack.c.b16 %v350, %v349
        %v408 = vpack.c.b16 %v352, %v351
        %v409 = vpack.c.b16 %v354, %v353
        %v410 = vpack.c.b16 %v356, %v355
        %v411 = vpack.c.b16 %v358, %v357
        %v412 = vpack.c.b16 %v360, %v359
        %v413 = vpack.c.b16 %v362, %v361
        %v414 = vpack.c.b16 %v364, %v363
        %v415 = vpack.c.b16 %v366, %v365
        %v416 = vpack.c.b16 %v368, %v367
        %v417 = vpack.c.b16 %v370, %v369
        %v418 = vpack.c.b16 %v372, %v371
        %v419 = vpack.c.b16 %v374, %v373
        %v420 = vpack.c.b16 %v376, %v375
        %v421 = vpack.c.b16 %v378, %v377
        %v422 = vpack.c.b16 %v380, %v379
        %v423 = vpack.c.b16 %v382, %v381
        %v424 = vpack.c.b16 %v384, %v383
        %v425 = vpack.c.b16 %v386, %v385
        %v426 = vpack.c.b16 %v388, %v387
        %v427 = vpack.c.b16 %v390, %v389
        %v428 = vpack.c.b16 %v392, %v391
        %v429 = vpack.c.b16 %v394, %v393
        %v430 = vpack.c.b16 %v396, %v395
        %v431 = vpack.c.b16 %v398, %v397
        %v432 = vpack.c.b16 %v400, %v399
        %465 = vmatprep.subr.bf16.mxu0 0
        %466 = vmatpush1.bf16.msra.mxu0 %v408
        %467 = vmatprep.subr.bf16.mxu0 0
        %468 = vmatpush1.bf16.msra.mxu0 %v407
        %469 = vmatprep.subr.bf16.mxu0 0
        %470 = vmatpush1.bf16.msra.mxu0 %v406
        %471 = vmatprep.subr.bf16.mxu0 0
        %472 = vmatpush1.bf16.msra.mxu0 %v405
        %473 = vmatprep.subr.bf16.mxu0 0
        %474 = vmatpush1.bf16.msra.mxu0 %v404
        %475 = vmatprep.subr.bf16.mxu0 0
        %476 = vmatpush1.bf16.msra.mxu0 %v403
        %477 = vmatprep.subr.bf16.mxu0 0
        %478 = vmatpush1.bf16.msra.mxu0 %v402
        %479 = vmatprep.subr.bf16.mxu0 0
        %480 = vmatpush1.bf16.msra.mxu0 %v401
        %481 = vmatprep.subr.bf16.mxu0 0
        %482 = vmatpush2.bf16.msra.mxu0 %v416
        %483 = vmatprep.subr.bf16.mxu0 0
        %484 = vmatpush2.bf16.msra.mxu0 %v415
        %485 = vmatprep.subr.bf16.mxu0 0
        %486 = vmatpush2.bf16.msra.mxu0 %v414
        %487 = vmatprep.subr.bf16.mxu0 0
        %488 = vmatpush2.bf16.msra.mxu0 %v413
        %489 = vmatprep.subr.bf16.mxu0 0
        %490 = vmatpush2.bf16.msra.mxu0 %v412
        %491 = vmatprep.subr.bf16.mxu0 0
        %492 = vmatpush2.bf16.msra.mxu0 %v411
        %493 = vmatprep.subr.bf16.mxu0 0
        %494 = vmatpush2.bf16.msra.mxu0 %v410
        %495 = vmatprep.subr.bf16.mxu0 0
        %496 = vmatpush2.bf16.msra.mxu0 %v409
        %497 = vmatprep.mubr.bf16.mxu0 %v264
        %498 = vmatmul.mubr.bf16.gmra.mxu0 %v263
        %v499 = vpop.f32.mrf.mxu0
        %v500 = vadd.f32 %v271, %v499
        %v501 = vpop.f32.mrf.mxu0
        %v502 = vpop.f32.mrf.mxu0
        %v503 = vadd.f32 %v271, %v502
        %v504 = vpop.f32.mrf.mxu0
        %505 = vdwg.mxu0
        %506 = vmatprep.subr.bf16.mxu0 0
        %507 = vmatpush1.bf16.msra.mxu0 %v424
        %508 = vmatprep.subr.bf16.mxu0 0
        %509 = vmatpush1.bf16.msra.mxu0 %v423
        %510 = vmatprep.subr.bf16.mxu0 0
        %511 = vmatpush1.bf16.msra.mxu0 %v422
        %512 = vmatprep.subr.bf16.mxu0 0
        %513 = vmatpush1.bf16.msra.mxu0 %v421
        %514 = vmatprep.subr.bf16.mxu0 0
        %515 = vmatpush1.bf16.msra.mxu0 %v420
        %516 = vmatprep.subr.bf16.mxu0 0
        %517 = vmatpush1.bf16.msra.mxu0 %v419
        %518 = vmatprep.subr.bf16.mxu0 0
        %519 = vmatpush1.bf16.msra.mxu0 %v418
        %520 = vmatprep.subr.bf16.mxu0 0
        %521 = vmatpush1.bf16.msra.mxu0 %v417
        %522 = vmatprep.subr.bf16.mxu0 0
        %523 = vmatpush2.bf16.msra.mxu0 %v432
        %524 = vmatprep.subr.bf16.mxu0 0
        %525 = vmatpush2.bf16.msra.mxu0 %v431
        %526 = vmatprep.subr.bf16.mxu0 0
        %527 = vmatpush2.bf16.msra.mxu0 %v430
        %528 = vmatprep.subr.bf16.mxu0 0
        %529 = vmatpush2.bf16.msra.mxu0 %v429
        %530 = vmatprep.subr.bf16.mxu0 0
        %531 = vmatpush2.bf16.msra.mxu0 %v428
        %532 = vmatprep.subr.bf16.mxu0 0
        %533 = vmatpush2.bf16.msra.mxu0 %v427
        %534 = vmatprep.subr.bf16.mxu0 0
        %535 = vmatpush2.bf16.msra.mxu0 %v426
        %536 = vmatprep.subr.bf16.mxu0 0
        %537 = vmatpush2.bf16.msra.mxu0 %v425
        %538 = vmatprep.mubr.bf16.mxu0 %v266
        %539 = vmatmul.mubr.bf16.gmra.mxu0 %v265
        %v540 = vpop.f32.mrf.mxu0
        %v541 = vadd.f32 %v500, %v540
        %v542 = vpop.f32.mrf.mxu0
        %v543 = vpop.f32.mrf.mxu0
        %v544 = vadd.f32 %v503, %v543
        %v545 = vpop.f32.mrf.mxu0
        %546 = vdwg.mxu0
        %v547 = vmul.f32 %v541, 0.2
        %v548 = vmul.f32 %v544, 0.2
        %v549 = vmax.f32 %v541, %v547
        %v550 = vmax.f32 %v544, %v548
        %551 = vst [vmem:[#allocation2] sm:$0x1] 0.0
        %552 = vst [vmem:[#allocation2 + $0x11] sm:$0x1] 0.0
        %553 = vst [vmem:[#allocation2 + $0x1] sm:$0xff] %v549
        %554 = vst [vmem:[#allocation2 + $0x9] sm:$0xff] %v550
        %v555 = vld [vmem:[#allocation2] ss:$2 sm:$0xff]
        %s556 = scalar_lea.vmem [#allocation2], 1
        %v557 = vld [vmem:[%s556] ss:$2 sm:$0xff]
        %s558 = scalar_lea.vmem [#allocation2], 2
        %v559 = vld [vmem:[%s558] ss:$2 sm:$0xff]
        %s560 = scalar_lea.vmem [#allocation2], 3
        %v561 = vld [vmem:[%s560] ss:$2 sm:$0xff]
        %s562 = scalar_lea.vmem [#allocation6], 256
        %v563 = vld [vmem:[%s562] sm:$0xf]
        %v564 = vld [vmem:[%s562 + $0x4] sm:$0xf]
        %v565 = vld [vmem:[%s562 + $0x8] sm:$0xf]
        %v566 = vld [vmem:[%s562 + $0xc] sm:$0xf]
        %v567 = vld [vmem:[%s562 + $0x10] sm:$0xf]
        %v568 = vld [vmem:[%s562 + $0x14] sm:$0xf]
        %v569 = vld [vmem:[%s562 + $0x18] sm:$0xf]
        %v570 = vld [vmem:[%s562 + $0x1c] sm:$0xf]
        %v571 = vld [vmem:[%s562 + $0x20] sm:$0xf]
        %v572 = vld [vmem:[%s562 + $0x24] sm:$0xf]
        %v573 = vld [vmem:[%s562 + $0x28] sm:$0xf]
        %v574 = vld [vmem:[%s562 + $0x2c] sm:$0xf]
        %v575 = vld [vmem:[%s562 + $0x30] sm:$0xf]
        %v576 = vld [vmem:[%s562 + $0x34] sm:$0xf]
        %v577 = vld [vmem:[%s562 + $0x38] sm:$0xf]
        %v578 = vld [vmem:[%s562 + $0x3c] sm:$0xf]
        %v579 = vld [vmem:[%s562 + $0x40] sm:$0xf]
        %v580 = vld [vmem:[%s562 + $0x44] sm:$0xf]
        %v581 = vld [vmem:[%s562 + $0x48] sm:$0xf]
        %v582 = vld [vmem:[%s562 + $0x4c] sm:$0xf]
        %v583 = vld [vmem:[%s562 + $0x50] sm:$0xf]
        %v584 = vld [vmem:[%s562 + $0x54] sm:$0xf]
        %v585 = vld [vmem:[%s562 + $0x58] sm:$0xf]
        %v586 = vld [vmem:[%s562 + $0x5c] sm:$0xf]
        %v587 = vld [vmem:[%s562 + $0x60] sm:$0xf]
        %v588 = vld [vmem:[%s562 + $0x64] sm:$0xf]
        %v589 = vld [vmem:[%s562 + $0x68] sm:$0xf]
        %v590 = vld [vmem:[%s562 + $0x6c] sm:$0xf]
        %v591 = vld [vmem:[%s562 + $0x70] sm:$0xf]
        %v592 = vld [vmem:[%s562 + $0x74] sm:$0xf]
        %v593 = vld [vmem:[%s562 + $0x78] sm:$0xf]
        %v594 = vld [vmem:[%s562 + $0x7c] sm:$0xf]
        %v595 = vld [vmem:[%s562 + $0x80] sm:$0xf]
        %v596 = vld [vmem:[%s562 + $0x84] sm:$0xf]
        %v597 = vld [vmem:[%s562 + $0x88] sm:$0xf]
        %v598 = vld [vmem:[%s562 + $0x8c] sm:$0xf]
        %v599 = vld [vmem:[%s562 + $0x90] sm:$0xf]
        %v600 = vld [vmem:[%s562 + $0x94] sm:$0xf]
        %v601 = vld [vmem:[%s562 + $0x98] sm:$0xf]
        %v602 = vld [vmem:[%s562 + $0x9c] sm:$0xf]
        %v603 = vld [vmem:[%s562 + $0xa0] sm:$0xf]
        %v604 = vld [vmem:[%s562 + $0xa4] sm:$0xf]
        %v605 = vld [vmem:[%s562 + $0xa8] sm:$0xf]
        %v606 = vld [vmem:[%s562 + $0xac] sm:$0xf]
        %v607 = vld [vmem:[%s562 + $0xb0] sm:$0xf]
        %v608 = vld [vmem:[%s562 + $0xb4] sm:$0xf]
        %v609 = vld [vmem:[%s562 + $0xb8] sm:$0xf]
        %v610 = vld [vmem:[%s562 + $0xbc] sm:$0xf]
        %v611 = vld [vmem:[%s562 + $0xc0] sm:$0xf]
        %v612 = vld [vmem:[%s562 + $0xc4] sm:$0xf]
        %v613 = vld [vmem:[%s562 + $0xc8] sm:$0xf]
        %v614 = vld [vmem:[%s562 + $0xcc] sm:$0xf]
        %v615 = vld [vmem:[%s562 + $0xd0] sm:$0xf]
        %v616 = vld [vmem:[%s562 + $0xd4] sm:$0xf]
        %v617 = vld [vmem:[%s562 + $0xd8] sm:$0xf]
        %v618 = vld [vmem:[%s562 + $0xdc] sm:$0xf]
        %v619 = vld [vmem:[%s562 + $0xe0] sm:$0xf]
        %v620 = vld [vmem:[%s562 + $0xe4] sm:$0xf]
        %v621 = vld [vmem:[%s562 + $0xe8] sm:$0xf]
        %v622 = vld [vmem:[%s562 + $0xec] sm:$0xf]
        %v623 = vld [vmem:[%s562 + $0xf0] sm:$0xf]
        %v624 = vld [vmem:[%s562 + $0xf4] sm:$0xf]
        %v625 = vld [vmem:[%s562 + $0xf8] sm:$0xf]
        %v626 = vld [vmem:[%s562 + $0xfc] sm:$0xf]
        %s627 = scalar_lea.vmem %s2, 1
        %v628 = vld [vmem:[%s627] sm:$0x1]
        %v629 = vpack.c.bf16 %v555, %v555
        %v630 = vpack.c.bf16 %v557, %v557
        %v631 = vpack.c.bf16 %v559, %v559
        %v632 = vpack.c.bf16 %v561, %v561
        %v634 = vlaneseq
        %v635 = vshrl.u32 %v634, 7
        %v636 = vsub.s32 0, %v635
        %v637 = vrot.slane %v628, %v636
        %v703 = vunpack.c.l.b16 %v563
        %v704 = vunpack.c.l.b16 %v564
        %v705 = vunpack.c.l.b16 %v565
        %v706 = vunpack.c.l.b16 %v566
        %v707 = vunpack.c.l.b16 %v567
        %v708 = vunpack.c.l.b16 %v568
        %v709 = vunpack.c.l.b16 %v569
        %v710 = vunpack.c.l.b16 %v570
        %v711 = vunpack.c.l.b16 %v571
        %v712 = vunpack.c.l.b16 %v572
        %v713 = vunpack.c.l.b16 %v573
        %v714 = vunpack.c.l.b16 %v574
        %v715 = vunpack.c.l.b16 %v575
        %v716 = vunpack.c.l.b16 %v576
        %v717 = vunpack.c.l.b16 %v577
        %v718 = vunpack.c.l.b16 %v578
        %v719 = vunpack.c.l.b16 %v579
        %v720 = vunpack.c.l.b16 %v580
        %v721 = vunpack.c.l.b16 %v581
        %v722 = vunpack.c.l.b16 %v582
        %v723 = vunpack.c.l.b16 %v583
        %v724 = vunpack.c.l.b16 %v584
        %v725 = vunpack.c.l.b16 %v585
        %v726 = vunpack.c.l.b16 %v586
        %v727 = vunpack.c.l.b16 %v587
        %v728 = vunpack.c.l.b16 %v588
        %v729 = vunpack.c.l.b16 %v589
        %v730 = vunpack.c.l.b16 %v590
        %v731 = vunpack.c.l.b16 %v591
        %v732 = vunpack.c.l.b16 %v592
        %v733 = vunpack.c.l.b16 %v593
        %v734 = vunpack.c.l.b16 %v594
        %v735 = vunpack.c.l.b16 %v595
        %v736 = vunpack.c.l.b16 %v596
        %v737 = vunpack.c.l.b16 %v597
        %v738 = vunpack.c.l.b16 %v598
        %v739 = vunpack.c.l.b16 %v599
        %v740 = vunpack.c.l.b16 %v600
        %v741 = vunpack.c.l.b16 %v601
        %v742 = vunpack.c.l.b16 %v602
        %v743 = vunpack.c.l.b16 %v603
        %v744 = vunpack.c.l.b16 %v604
        %v745 = vunpack.c.l.b16 %v605
        %v746 = vunpack.c.l.b16 %v606
        %v747 = vunpack.c.l.b16 %v607
        %v748 = vunpack.c.l.b16 %v608
        %v749 = vunpack.c.l.b16 %v609
        %v750 = vunpack.c.l.b16 %v610
        %v751 = vunpack.c.l.b16 %v611
        %v752 = vunpack.c.l.b16 %v612
        %v753 = vunpack.c.l.b16 %v613
        %v754 = vunpack.c.l.b16 %v614
        %v755 = vunpack.c.l.b16 %v615
        %v756 = vunpack.c.l.b16 %v616
        %v757 = vunpack.c.l.b16 %v617
        %v758 = vunpack.c.l.b16 %v618
        %v759 = vunpack.c.l.b16 %v619
        %v760 = vunpack.c.l.b16 %v620
        %v761 = vunpack.c.l.b16 %v621
        %v762 = vunpack.c.l.b16 %v622
        %v763 = vunpack.c.l.b16 %v623
        %v764 = vunpack.c.l.b16 %v624
        %v765 = vunpack.c.l.b16 %v625
        %v766 = vunpack.c.l.b16 %v626
        %v767 = vpack.c.b16 %v704, %v703
        %v768 = vpack.c.b16 %v706, %v705
        %v769 = vpack.c.b16 %v708, %v707
        %v770 = vpack.c.b16 %v710, %v709
        %v771 = vpack.c.b16 %v712, %v711
        %v772 = vpack.c.b16 %v714, %v713
        %v773 = vpack.c.b16 %v716, %v715
        %v774 = vpack.c.b16 %v718, %v717
        %v775 = vpack.c.b16 %v720, %v719
        %v776 = vpack.c.b16 %v722, %v721
        %v777 = vpack.c.b16 %v724, %v723
        %v778 = vpack.c.b16 %v726, %v725
        %v779 = vpack.c.b16 %v728, %v727
        %v780 = vpack.c.b16 %v730, %v729
        %v781 = vpack.c.b16 %v732, %v731
        %v782 = vpack.c.b16 %v734, %v733
        %v783 = vpack.c.b16 %v736, %v735
        %v784 = vpack.c.b16 %v738, %v737
        %v785 = vpack.c.b16 %v740, %v739
        %v786 = vpack.c.b16 %v742, %v741
        %v787 = vpack.c.b16 %v744, %v743
        %v788 = vpack.c.b16 %v746, %v745
        %v789 = vpack.c.b16 %v748, %v747
        %v790 = vpack.c.b16 %v750, %v749
        %v791 = vpack.c.b16 %v752, %v751
        %v792 = vpack.c.b16 %v754, %v753
        %v793 = vpack.c.b16 %v756, %v755
        %v794 = vpack.c.b16 %v758, %v757
        %v795 = vpack.c.b16 %v760, %v759
        %v796 = vpack.c.b16 %v762, %v761
        %v797 = vpack.c.b16 %v764, %v763
        %v798 = vpack.c.b16 %v766, %v765
        %831 = vmatprep.subr.bf16.mxu0 0
        %832 = vmatpush1.bf16.msra.mxu0 %v774
        %833 = vmatprep.subr.bf16.mxu0 0
        %834 = vmatpush1.bf16.msra.mxu0 %v773
        %835 = vmatprep.subr.bf16.mxu0 0
        %836 = vmatpush1.bf16.msra.mxu0 %v772
        %837 = vmatprep.subr.bf16.mxu0 0
        %838 = vmatpush1.bf16.msra.mxu0 %v771
        %839 = vmatprep.subr.bf16.mxu0 0
        %840 = vmatpush1.bf16.msra.mxu0 %v770
        %841 = vmatprep.subr.bf16.mxu0 0
        %842 = vmatpush1.bf16.msra.mxu0 %v769
        %843 = vmatprep.subr.bf16.mxu0 0
        %844 = vmatpush1.bf16.msra.mxu0 %v768
        %845 = vmatprep.subr.bf16.mxu0 0
        %846 = vmatpush1.bf16.msra.mxu0 %v767
        %847 = vmatprep.subr.bf16.mxu0 0
        %848 = vmatpush2.bf16.msra.mxu0 %v782
        %849 = vmatprep.subr.bf16.mxu0 0
        %850 = vmatpush2.bf16.msra.mxu0 %v781
        %851 = vmatprep.subr.bf16.mxu0 0
        %852 = vmatpush2.bf16.msra.mxu0 %v780
        %853 = vmatprep.subr.bf16.mxu0 0
        %854 = vmatpush2.bf16.msra.mxu0 %v779
        %855 = vmatprep.subr.bf16.mxu0 0
        %856 = vmatpush2.bf16.msra.mxu0 %v778
        %857 = vmatprep.subr.bf16.mxu0 0
        %858 = vmatpush2.bf16.msra.mxu0 %v777
        %859 = vmatprep.subr.bf16.mxu0 0
        %860 = vmatpush2.bf16.msra.mxu0 %v776
        %861 = vmatprep.subr.bf16.mxu0 0
        %862 = vmatpush2.bf16.msra.mxu0 %v775
        %863 = vmatprep.mubr.bf16.mxu0 %v630
        %864 = vmatmul.mubr.bf16.gmra.mxu0 %v629
        %v865 = vpop.f32.mrf.mxu0
        %v866 = vadd.f32 %v637, %v865
        %v867 = vpop.f32.mrf.mxu0
        %v868 = vpop.f32.mrf.mxu0
        %v869 = vpop.f32.mrf.mxu0
        %870 = vdwg.mxu0
        %871 = vmatprep.subr.bf16.mxu0 0
        %872 = vmatpush1.bf16.msra.mxu0 %v790
        %873 = vmatprep.subr.bf16.mxu0 0
        %874 = vmatpush1.bf16.msra.mxu0 %v789
        %875 = vmatprep.subr.bf16.mxu0 0
        %876 = vmatpush1.bf16.msra.mxu0 %v788
        %877 = vmatprep.subr.bf16.mxu0 0
        %878 = vmatpush1.bf16.msra.mxu0 %v787
        %879 = vmatprep.subr.bf16.mxu0 0
        %880 = vmatpush1.bf16.msra.mxu0 %v786
        %881 = vmatprep.subr.bf16.mxu0 0
        %882 = vmatpush1.bf16.msra.mxu0 %v785
        %883 = vmatprep.subr.bf16.mxu0 0
        %884 = vmatpush1.bf16.msra.mxu0 %v784
        %885 = vmatprep.subr.bf16.mxu0 0
        %886 = vmatpush1.bf16.msra.mxu0 %v783
        %887 = vmatprep.subr.bf16.mxu0 0
        %888 = vmatpush2.bf16.msra.mxu0 %v798
        %889 = vmatprep.subr.bf16.mxu0 0
        %890 = vmatpush2.bf16.msra.mxu0 %v797
        %891 = vmatprep.subr.bf16.mxu0 0
        %892 = vmatpush2.bf16.msra.mxu0 %v796
        %893 = vmatprep.subr.bf16.mxu0 0
        %894 = vmatpush2.bf16.msra.mxu0 %v795
        %895 = vmatprep.subr.bf16.mxu0 0
        %896 = vmatpush2.bf16.msra.mxu0 %v794
        %897 = vmatprep.subr.bf16.mxu0 0
        %898 = vmatpush2.bf16.msra.mxu0 %v793
        %899 = vmatprep.subr.bf16.mxu0 0
        %900 = vmatpush2.bf16.msra.mxu0 %v792
        %901 = vmatprep.subr.bf16.mxu0 0
        %902 = vmatpush2.bf16.msra.mxu0 %v791
        %903 = vmatprep.mubr.bf16.mxu0 %v632
        %904 = vmatmul.mubr.bf16.gmra.mxu0 %v631
        %v905 = vpop.f32.mrf.mxu0
        %v906 = vadd.f32 %v866, %v905
        %v907 = vpop.f32.mrf.mxu0
        %v908 = vpop.f32.mrf.mxu0
        %v909 = vpop.f32.mrf.mxu0
        %910 = vdwg.mxu0
        %v911 = vmul.f32 %v906, 0.2
        %v912 = vmax.f32 %v906, %v911
        %913 = vst [vmem:[#allocation3] sm:$0x1] 0.0
        %914 = vst [vmem:[#allocation3 + $0x9] sm:$0x1] 0.0
        %915 = vst [vmem:[#allocation3 + $0x1] sm:$0xff] %v912
        %v916 = vld [vmem:[#allocation3] ss:$2 sm:$0xf]
        %s917 = scalar_lea.vmem [#allocation3], 1
        %v918 = vld [vmem:[%s917] ss:$2 sm:$0xf]
        %s919 = scalar_lea.vmem [#allocation3], 2
        %v920 = vld [vmem:[%s919] ss:$2 sm:$0xf]
        %s921 = scalar_lea.vmem [#allocation3], 3
        %v922 = vld [vmem:[%s921] ss:$2 sm:$0xf]
        %s923 = scalar_lea.vmem [#allocation6], 512
        %v924 = vld [vmem:[%s923] sm:$0xf]
        %v925 = vld [vmem:[%s923 + $0x4] sm:$0xf]
        %v926 = vld [vmem:[%s923 + $0x8] sm:$0xf]
        %v927 = vld [vmem:[%s923 + $0xc] sm:$0xf]
        %v928 = vld [vmem:[%s923 + $0x10] sm:$0xf]
        %v929 = vld [vmem:[%s923 + $0x14] sm:$0xf]
        %v930 = vld [vmem:[%s923 + $0x18] sm:$0xf]
        %v931 = vld [vmem:[%s923 + $0x1c] sm:$0xf]
        %v932 = vld [vmem:[%s923 + $0x20] sm:$0xf]
        %v933 = vld [vmem:[%s923 + $0x24] sm:$0xf]
        %v934 = vld [vmem:[%s923 + $0x28] sm:$0xf]
        %v935 = vld [vmem:[%s923 + $0x2c] sm:$0xf]
        %v936 = vld [vmem:[%s923 + $0x30] sm:$0xf]
        %v937 = vld [vmem:[%s923 + $0x34] sm:$0xf]
        %v938 = vld [vmem:[%s923 + $0x38] sm:$0xf]
        %v939 = vld [vmem:[%s923 + $0x3c] sm:$0xf]
        %v940 = vld [vmem:[%s923 + $0x40] sm:$0xf]
        %v941 = vld [vmem:[%s923 + $0x44] sm:$0xf]
        %v942 = vld [vmem:[%s923 + $0x48] sm:$0xf]
        %v943 = vld [vmem:[%s923 + $0x4c] sm:$0xf]
        %v944 = vld [vmem:[%s923 + $0x50] sm:$0xf]
        %v945 = vld [vmem:[%s923 + $0x54] sm:$0xf]
        %v946 = vld [vmem:[%s923 + $0x58] sm:$0xf]
        %v947 = vld [vmem:[%s923 + $0x5c] sm:$0xf]
        %v948 = vld [vmem:[%s923 + $0x60] sm:$0xf]
        %v949 = vld [vmem:[%s923 + $0x64] sm:$0xf]
        %v950 = vld [vmem:[%s923 + $0x68] sm:$0xf]
        %v951 = vld [vmem:[%s923 + $0x6c] sm:$0xf]
        %v952 = vld [vmem:[%s923 + $0x70] sm:$0xf]
        %v953 = vld [vmem:[%s923 + $0x74] sm:$0xf]
        %v954 = vld [vmem:[%s923 + $0x78] sm:$0xf]
        %v955 = vld [vmem:[%s923 + $0x7c] sm:$0xf]
        %v956 = vld [vmem:[%s923 + $0x80] sm:$0xf]
        %v957 = vld [vmem:[%s923 + $0x84] sm:$0xf]
        %v958 = vld [vmem:[%s923 + $0x88] sm:$0xf]
        %v959 = vld [vmem:[%s923 + $0x8c] sm:$0xf]
        %v960 = vld [vmem:[%s923 + $0x90] sm:$0xf]
        %v961 = vld [vmem:[%s923 + $0x94] sm:$0xf]
        %v962 = vld [vmem:[%s923 + $0x98] sm:$0xf]
        %v963 = vld [vmem:[%s923 + $0x9c] sm:$0xf]
        %v964 = vld [vmem:[%s923 + $0xa0] sm:$0xf]
        %v965 = vld [vmem:[%s923 + $0xa4] sm:$0xf]
        %v966 = vld [vmem:[%s923 + $0xa8] sm:$0xf]
        %v967 = vld [vmem:[%s923 + $0xac] sm:$0xf]
        %v968 = vld [vmem:[%s923 + $0xb0] sm:$0xf]
        %v969 = vld [vmem:[%s923 + $0xb4] sm:$0xf]
        %v970 = vld [vmem:[%s923 + $0xb8] sm:$0xf]
        %v971 = vld [vmem:[%s923 + $0xbc] sm:$0xf]
        %v972 = vld [vmem:[%s923 + $0xc0] sm:$0xf]
        %v973 = vld [vmem:[%s923 + $0xc4] sm:$0xf]
        %v974 = vld [vmem:[%s923 + $0xc8] sm:$0xf]
        %v975 = vld [vmem:[%s923 + $0xcc] sm:$0xf]
        %v976 = vld [vmem:[%s923 + $0xd0] sm:$0xf]
        %v977 = vld [vmem:[%s923 + $0xd4] sm:$0xf]
        %v978 = vld [vmem:[%s923 + $0xd8] sm:$0xf]
        %v979 = vld [vmem:[%s923 + $0xdc] sm:$0xf]
        %v980 = vld [vmem:[%s923 + $0xe0] sm:$0xf]
        %v981 = vld [vmem:[%s923 + $0xe4] sm:$0xf]
        %v982 = vld [vmem:[%s923 + $0xe8] sm:$0xf]
        %v983 = vld [vmem:[%s923 + $0xec] sm:$0xf]
        %v984 = vld [vmem:[%s923 + $0xf0] sm:$0xf]
        %v985 = vld [vmem:[%s923 + $0xf4] sm:$0xf]
        %v986 = vld [vmem:[%s923 + $0xf8] sm:$0xf]
        %v987 = vld [vmem:[%s923 + $0xfc] sm:$0xf]
        %s988 = scalar_lea.vmem %s2, 2
        %v989 = vld [vmem:[%s988] sm:$0x1]
        %v990 = vpack.c.bf16 %v916, %v916
        %v991 = vpack.c.bf16 %v918, %v918
        %v992 = vpack.c.bf16 %v920, %v920
        %v993 = vpack.c.bf16 %v922, %v922
        %v995 = vlaneseq
        %v996 = vshrl.u32 %v995, 7
        %v997 = vsub.s32 0, %v996
        %v998 = vrot.slane %v989, %v997
        %v1064 = vunpack.c.l.b16 %v924
        %v1065 = vunpack.c.l.b16 %v925
        %v1066 = vunpack.c.l.b16 %v926
        %v1067 = vunpack.c.l.b16 %v927
        %v1068 = vunpack.c.l.b16 %v928
        %v1069 = vunpack.c.l.b16 %v929
        %v1070 = vunpack.c.l.b16 %v930
        %v1071 = vunpack.c.l.b16 %v931
        %v1072 = vunpack.c.l.b16 %v932
        %v1073 = vunpack.c.l.b16 %v933
        %v1074 = vunpack.c.l.b16 %v934
        %v1075 = vunpack.c.l.b16 %v935
        %v1076 = vunpack.c.l.b16 %v936
        %v1077 = vunpack.c.l.b16 %v937
        %v1078 = vunpack.c.l.b16 %v938
        %v1079 = vunpack.c.l.b16 %v939
        %v1080 = vunpack.c.l.b16 %v940
        %v1081 = vunpack.c.l.b16 %v941
        %v1082 = vunpack.c.l.b16 %v942
        %v1083 = vunpack.c.l.b16 %v943
        %v1084 = vunpack.c.l.b16 %v944
        %v1085 = vunpack.c.l.b16 %v945
        %v1086 = vunpack.c.l.b16 %v946
        %v1087 = vunpack.c.l.b16 %v947
        %v1088 = vunpack.c.l.b16 %v948
        %v1089 = vunpack.c.l.b16 %v949
        %v1090 = vunpack.c.l.b16 %v950
        %v1091 = vunpack.c.l.b16 %v951
        %v1092 = vunpack.c.l.b16 %v952
        %v1093 = vunpack.c.l.b16 %v953
        %v1094 = vunpack.c.l.b16 %v954
        %v1095 = vunpack.c.l.b16 %v955
        %v1096 = vunpack.c.l.b16 %v956
        %v1097 = vunpack.c.l.b16 %v957
        %v1098 = vunpack.c.l.b16 %v958
        %v1099 = vunpack.c.l.b16 %v959
        %v1100 = vunpack.c.l.b16 %v960
        %v1101 = vunpack.c.l.b16 %v961
        %v1102 = vunpack.c.l.b16 %v962
        %v1103 = vunpack.c.l.b16 %v963
        %v1104 = vunpack.c.l.b16 %v964
        %v1105 = vunpack.c.l.b16 %v965
        %v1106 = vunpack.c.l.b16 %v966
        %v1107 = vunpack.c.l.b16 %v967
        %v1108 = vunpack.c.l.b16 %v968
        %v1109 = vunpack.c.l.b16 %v969
        %v1110 = vunpack.c.l.b16 %v970
        %v1111 = vunpack.c.l.b16 %v971
        %v1112 = vunpack.c.l.b16 %v972
        %v1113 = vunpack.c.l.b16 %v973
        %v1114 = vunpack.c.l.b16 %v974
        %v1115 = vunpack.c.l.b16 %v975
        %v1116 = vunpack.c.l.b16 %v976
        %v1117 = vunpack.c.l.b16 %v977
        %v1118 = vunpack.c.l.b16 %v978
        %v1119 = vunpack.c.l.b16 %v979
        %v1120 = vunpack.c.l.b16 %v980
        %v1121 = vunpack.c.l.b16 %v981
        %v1122 = vunpack.c.l.b16 %v982
        %v1123 = vunpack.c.l.b16 %v983
        %v1124 = vunpack.c.l.b16 %v984
        %v1125 = vunpack.c.l.b16 %v985
        %v1126 = vunpack.c.l.b16 %v986
        %v1127 = vunpack.c.l.b16 %v987
        %v1128 = vpack.c.b16 %v1065, %v1064
        %v1129 = vpack.c.b16 %v1067, %v1066
        %v1130 = vpack.c.b16 %v1069, %v1068
        %v1131 = vpack.c.b16 %v1071, %v1070
        %v1132 = vpack.c.b16 %v1073, %v1072
        %v1133 = vpack.c.b16 %v1075, %v1074
        %v1134 = vpack.c.b16 %v1077, %v1076
        %v1135 = vpack.c.b16 %v1079, %v1078
        %v1136 = vpack.c.b16 %v1081, %v1080
        %v1137 = vpack.c.b16 %v1083, %v1082
        %v1138 = vpack.c.b16 %v1085, %v1084
        %v1139 = vpack.c.b16 %v1087, %v1086
        %v1140 = vpack.c.b16 %v1089, %v1088
        %v1141 = vpack.c.b16 %v1091, %v1090
        %v1142 = vpack.c.b16 %v1093, %v1092
        %v1143 = vpack.c.b16 %v1095, %v1094
        %v1144 = vpack.c.b16 %v1097, %v1096
        %v1145 = vpack.c.b16 %v1099, %v1098
        %v1146 = vpack.c.b16 %v1101, %v1100
        %v1147 = vpack.c.b16 %v1103, %v1102
        %v1148 = vpack.c.b16 %v1105, %v1104
        %v1149 = vpack.c.b16 %v1107, %v1106
        %v1150 = vpack.c.b16 %v1109, %v1108
        %v1151 = vpack.c.b16 %v1111, %v1110
        %v1152 = vpack.c.b16 %v1113, %v1112
        %v1153 = vpack.c.b16 %v1115, %v1114
        %v1154 = vpack.c.b16 %v1117, %v1116
        %v1155 = vpack.c.b16 %v1119, %v1118
        %v1156 = vpack.c.b16 %v1121, %v1120
        %v1157 = vpack.c.b16 %v1123, %v1122
        %v1158 = vpack.c.b16 %v1125, %v1124
        %v1159 = vpack.c.b16 %v1127, %v1126
        %1192 = vmatprep.subr.bf16.mxu0 0
        %1193 = vmatpush1.bf16.msra.mxu0 %v1135
        %1194 = vmatprep.subr.bf16.mxu0 0
        %1195 = vmatpush1.bf16.msra.mxu0 %v1134
        %1196 = vmatprep.subr.bf16.mxu0 0
        %1197 = vmatpush1.bf16.msra.mxu0 %v1133
        %1198 = vmatprep.subr.bf16.mxu0 0
        %1199 = vmatpush1.bf16.msra.mxu0 %v1132
        %1200 = vmatprep.subr.bf16.mxu0 0
        %1201 = vmatpush1.bf16.msra.mxu0 %v1131
        %1202 = vmatprep.subr.bf16.mxu0 0
        %1203 = vmatpush1.bf16.msra.mxu0 %v1130
        %1204 = vmatprep.subr.bf16.mxu0 0
        %1205 = vmatpush1.bf16.msra.mxu0 %v1129
        %1206 = vmatprep.subr.bf16.mxu0 0
        %1207 = vmatpush1.bf16.msra.mxu0 %v1128
        %1208 = vmatprep.subr.bf16.mxu0 0
        %1209 = vmatpush2.bf16.msra.mxu0 %v1143
        %1210 = vmatprep.subr.bf16.mxu0 0
        %1211 = vmatpush2.bf16.msra.mxu0 %v1142
        %1212 = vmatprep.subr.bf16.mxu0 0
        %1213 = vmatpush2.bf16.msra.mxu0 %v1141
        %1214 = vmatprep.subr.bf16.mxu0 0
        %1215 = vmatpush2.bf16.msra.mxu0 %v1140
        %1216 = vmatprep.subr.bf16.mxu0 0
        %1217 = vmatpush2.bf16.msra.mxu0 %v1139
        %1218 = vmatprep.subr.bf16.mxu0 0
        %1219 = vmatpush2.bf16.msra.mxu0 %v1138
        %1220 = vmatprep.subr.bf16.mxu0 0
        %1221 = vmatpush2.bf16.msra.mxu0 %v1137
        %1222 = vmatprep.subr.bf16.mxu0 0
        %1223 = vmatpush2.bf16.msra.mxu0 %v1136
        %1224 = vmatprep.mubr.bf16.mxu0 %v991
        %1225 = vmatmul.mubr.bf16.gmra.mxu0 %v990
        %v1226 = vpop.f32.mrf.mxu0
        %v1227 = vadd.f32 %v998, %v1226
        %v1228 = vpop.f32.mrf.mxu0
        %v1229 = vpop.f32.mrf.mxu0
        %v1230 = vpop.f32.mrf.mxu0
        %1231 = vdwg.mxu0
        %1232 = vmatprep.subr.bf16.mxu0 0
        %1233 = vmatpush1.bf16.msra.mxu0 %v1151
        %1234 = vmatprep.subr.bf16.mxu0 0
        %1235 = vmatpush1.bf16.msra.mxu0 %v1150
        %1236 = vmatprep.subr.bf16.mxu0 0
        %1237 = vmatpush1.bf16.msra.mxu0 %v1149
        %1238 = vmatprep.subr.bf16.mxu0 0
        %1239 = vmatpush1.bf16.msra.mxu0 %v1148
        %1240 = vmatprep.subr.bf16.mxu0 0
        %1241 = vmatpush1.bf16.msra.mxu0 %v1147
        %1242 = vmatprep.subr.bf16.mxu0 0
        %1243 = vmatpush1.bf16.msra.mxu0 %v1146
        %1244 = vmatprep.subr.bf16.mxu0 0
        %1245 = vmatpush1.bf16.msra.mxu0 %v1145
        %1246 = vmatprep.subr.bf16.mxu0 0
        %1247 = vmatpush1.bf16.msra.mxu0 %v1144
        %1248 = vmatprep.subr.bf16.mxu0 0
        %1249 = vmatpush2.bf16.msra.mxu0 %v1159
        %1250 = vmatprep.subr.bf16.mxu0 0
        %1251 = vmatpush2.bf16.msra.mxu0 %v1158
        %1252 = vmatprep.subr.bf16.mxu0 0
        %1253 = vmatpush2.bf16.msra.mxu0 %v1157
        %1254 = vmatprep.subr.bf16.mxu0 0
        %1255 = vmatpush2.bf16.msra.mxu0 %v1156
        %1256 = vmatprep.subr.bf16.mxu0 0
        %1257 = vmatpush2.bf16.msra.mxu0 %v1155
        %1258 = vmatprep.subr.bf16.mxu0 0
        %1259 = vmatpush2.bf16.msra.mxu0 %v1154
        %1260 = vmatprep.subr.bf16.mxu0 0
        %1261 = vmatpush2.bf16.msra.mxu0 %v1153
        %1262 = vmatprep.subr.bf16.mxu0 0
        %1263 = vmatpush2.bf16.msra.mxu0 %v1152
        %1264 = vmatprep.mubr.bf16.mxu0 %v993
        %1265 = vmatmul.mubr.bf16.gmra.mxu0 %v992
        %v1266 = vpop.f32.mrf.mxu0
        %v1267 = vadd.f32 %v1227, %v1266
        %v1268 = vpop.f32.mrf.mxu0
        %v1269 = vpop.f32.mrf.mxu0
        %v1270 = vpop.f32.mrf.mxu0
        %1271 = vdwg.mxu0
        %v1272 = vmul.f32 %v1267, 0.2
        %v1273 = vmax.f32 %v1267, %v1272
        %1274 = vst [vmem:[#allocation4] sm:$0x1] 0.0
        %1275 = vst [vmem:[#allocation4 + $0x5] sm:$0x1] 0.0
        %1276 = vst [vmem:[#allocation4 + $0x1] sm:$0xf] %v1273
        %v1277 = vld [vmem:[#allocation4] ss:$2 sm:$0x3]
        %s1278 = scalar_lea.vmem [#allocation4], 1
        %v1279 = vld [vmem:[%s1278] ss:$2 sm:$0x3]
        %s1280 = scalar_lea.vmem [#allocation4], 2
        %v1281 = vld [vmem:[%s1280] ss:$2 sm:$0x3]
        %s1282 = scalar_lea.vmem [#allocation4], 3
        %v1283 = vld [vmem:[%s1282] ss:$2 sm:$0x3]
        %s1284 = scalar_lea.vmem [#allocation6], 768
        %v1285 = vld [vmem:[%s1284] sm:$0xf]
        %v1286 = vld [vmem:[%s1284 + $0x4] sm:$0xf]
        %v1287 = vld [vmem:[%s1284 + $0x8] sm:$0xf]
        %v1288 = vld [vmem:[%s1284 + $0xc] sm:$0xf]
        %v1289 = vld [vmem:[%s1284 + $0x10] sm:$0xf]
        %v1290 = vld [vmem:[%s1284 + $0x14] sm:$0xf]
        %v1291 = vld [vmem:[%s1284 + $0x18] sm:$0xf]
        %v1292 = vld [vmem:[%s1284 + $0x1c] sm:$0xf]
        %v1293 = vld [vmem:[%s1284 + $0x20] sm:$0xf]
        %v1294 = vld [vmem:[%s1284 + $0x24] sm:$0xf]
        %v1295 = vld [vmem:[%s1284 + $0x28] sm:$0xf]
        %v1296 = vld [vmem:[%s1284 + $0x2c] sm:$0xf]
        %v1297 = vld [vmem:[%s1284 + $0x30] sm:$0xf]
        %v1298 = vld [vmem:[%s1284 + $0x34] sm:$0xf]
        %v1299 = vld [vmem:[%s1284 + $0x38] sm:$0xf]
        %v1300 = vld [vmem:[%s1284 + $0x3c] sm:$0xf]
        %v1301 = vld [vmem:[%s1284 + $0x40] sm:$0xf]
        %v1302 = vld [vmem:[%s1284 + $0x44] sm:$0xf]
        %v1303 = vld [vmem:[%s1284 + $0x48] sm:$0xf]
        %v1304 = vld [vmem:[%s1284 + $0x4c] sm:$0xf]
        %v1305 = vld [vmem:[%s1284 + $0x50] sm:$0xf]
        %v1306 = vld [vmem:[%s1284 + $0x54] sm:$0xf]
        %v1307 = vld [vmem:[%s1284 + $0x58] sm:$0xf]
        %v1308 = vld [vmem:[%s1284 + $0x5c] sm:$0xf]
        %v1309 = vld [vmem:[%s1284 + $0x60] sm:$0xf]
        %v1310 = vld [vmem:[%s1284 + $0x64] sm:$0xf]
        %v1311 = vld [vmem:[%s1284 + $0x68] sm:$0xf]
        %v1312 = vld [vmem:[%s1284 + $0x6c] sm:$0xf]
        %v1313 = vld [vmem:[%s1284 + $0x70] sm:$0xf]
        %v1314 = vld [vmem:[%s1284 + $0x74] sm:$0xf]
        %v1315 = vld [vmem:[%s1284 + $0x78] sm:$0xf]
        %v1316 = vld [vmem:[%s1284 + $0x7c] sm:$0xf]
        %v1317 = vld [vmem:[%s1284 + $0x80] sm:$0xf]
        %v1318 = vld [vmem:[%s1284 + $0x84] sm:$0xf]
        %v1319 = vld [vmem:[%s1284 + $0x88] sm:$0xf]
        %v1320 = vld [vmem:[%s1284 + $0x8c] sm:$0xf]
        %v1321 = vld [vmem:[%s1284 + $0x90] sm:$0xf]
        %v1322 = vld [vmem:[%s1284 + $0x94] sm:$0xf]
        %v1323 = vld [vmem:[%s1284 + $0x98] sm:$0xf]
        %v1324 = vld [vmem:[%s1284 + $0x9c] sm:$0xf]
        %v1325 = vld [vmem:[%s1284 + $0xa0] sm:$0xf]
        %v1326 = vld [vmem:[%s1284 + $0xa4] sm:$0xf]
        %v1327 = vld [vmem:[%s1284 + $0xa8] sm:$0xf]
        %v1328 = vld [vmem:[%s1284 + $0xac] sm:$0xf]
        %v1329 = vld [vmem:[%s1284 + $0xb0] sm:$0xf]
        %v1330 = vld [vmem:[%s1284 + $0xb4] sm:$0xf]
        %v1331 = vld [vmem:[%s1284 + $0xb8] sm:$0xf]
        %v1332 = vld [vmem:[%s1284 + $0xbc] sm:$0xf]
        %v1333 = vld [vmem:[%s1284 + $0xc0] sm:$0xf]
        %v1334 = vld [vmem:[%s1284 + $0xc4] sm:$0xf]
        %v1335 = vld [vmem:[%s1284 + $0xc8] sm:$0xf]
        %v1336 = vld [vmem:[%s1284 + $0xcc] sm:$0xf]
        %v1337 = vld [vmem:[%s1284 + $0xd0] sm:$0xf]
        %v1338 = vld [vmem:[%s1284 + $0xd4] sm:$0xf]
        %v1339 = vld [vmem:[%s1284 + $0xd8] sm:$0xf]
        %v1340 = vld [vmem:[%s1284 + $0xdc] sm:$0xf]
        %v1341 = vld [vmem:[%s1284 + $0xe0] sm:$0xf]
        %v1342 = vld [vmem:[%s1284 + $0xe4] sm:$0xf]
        %v1343 = vld [vmem:[%s1284 + $0xe8] sm:$0xf]
        %v1344 = vld [vmem:[%s1284 + $0xec] sm:$0xf]
        %v1345 = vld [vmem:[%s1284 + $0xf0] sm:$0xf]
        %v1346 = vld [vmem:[%s1284 + $0xf4] sm:$0xf]
        %v1347 = vld [vmem:[%s1284 + $0xf8] sm:$0xf]
        %v1348 = vld [vmem:[%s1284 + $0xfc] sm:$0xf]
        %s1349 = scalar_lea.vmem %s2, 3
        %v1350 = vld [vmem:[%s1349] sm:$0x1]
        %v1351 = vpack.c.bf16 %v1277, %v1277
        %v1352 = vpack.c.bf16 %v1279, %v1279
        %v1353 = vpack.c.bf16 %v1281, %v1281
        %v1354 = vpack.c.bf16 %v1283, %v1283
        %v1356 = vlaneseq
        %v1357 = vshrl.u32 %v1356, 7
        %v1358 = vsub.s32 0, %v1357
        %v1359 = vrot.slane %v1350, %v1358
        %v1425 = vunpack.c.l.b16 %v1285
        %v1426 = vunpack.c.l.b16 %v1286
        %v1427 = vunpack.c.l.b16 %v1287
        %v1428 = vunpack.c.l.b16 %v1288
        %v1429 = vunpack.c.l.b16 %v1289
        %v1430 = vunpack.c.l.b16 %v1290
        %v1431 = vunpack.c.l.b16 %v1291
        %v1432 = vunpack.c.l.b16 %v1292
        %v1433 = vunpack.c.l.b16 %v1293
        %v1434 = vunpack.c.l.b16 %v1294
        %v1435 = vunpack.c.l.b16 %v1295
        %v1436 = vunpack.c.l.b16 %v1296
        %v1437 = vunpack.c.l.b16 %v1297
        %v1438 = vunpack.c.l.b16 %v1298
        %v1439 = vunpack.c.l.b16 %v1299
        %v1440 = vunpack.c.l.b16 %v1300
        %v1441 = vunpack.c.l.b16 %v1301
        %v1442 = vunpack.c.l.b16 %v1302
        %v1443 = vunpack.c.l.b16 %v1303
        %v1444 = vunpack.c.l.b16 %v1304
        %v1445 = vunpack.c.l.b16 %v1305
        %v1446 = vunpack.c.l.b16 %v1306
        %v1447 = vunpack.c.l.b16 %v1307
        %v1448 = vunpack.c.l.b16 %v1308
        %v1449 = vunpack.c.l.b16 %v1309
        %v1450 = vunpack.c.l.b16 %v1310
        %v1451 = vunpack.c.l.b16 %v1311
        %v1452 = vunpack.c.l.b16 %v1312
        %v1453 = vunpack.c.l.b16 %v1313
        %v1454 = vunpack.c.l.b16 %v1314
        %v1455 = vunpack.c.l.b16 %v1315
        %v1456 = vunpack.c.l.b16 %v1316
        %v1457 = vunpack.c.l.b16 %v1317
        %v1458 = vunpack.c.l.b16 %v1318
        %v1459 = vunpack.c.l.b16 %v1319
        %v1460 = vunpack.c.l.b16 %v1320
        %v1461 = vunpack.c.l.b16 %v1321
        %v1462 = vunpack.c.l.b16 %v1322
        %v1463 = vunpack.c.l.b16 %v1323
        %v1464 = vunpack.c.l.b16 %v1324
        %v1465 = vunpack.c.l.b16 %v1325
        %v1466 = vunpack.c.l.b16 %v1326
        %v1467 = vunpack.c.l.b16 %v1327
        %v1468 = vunpack.c.l.b16 %v1328
        %v1469 = vunpack.c.l.b16 %v1329
        %v1470 = vunpack.c.l.b16 %v1330
        %v1471 = vunpack.c.l.b16 %v1331
        %v1472 = vunpack.c.l.b16 %v1332
        %v1473 = vunpack.c.l.b16 %v1333
        %v1474 = vunpack.c.l.b16 %v1334
        %v1475 = vunpack.c.l.b16 %v1335
        %v1476 = vunpack.c.l.b16 %v1336
        %v1477 = vunpack.c.l.b16 %v1337
        %v1478 = vunpack.c.l.b16 %v1338
        %v1479 = vunpack.c.l.b16 %v1339
        %v1480 = vunpack.c.l.b16 %v1340
        %v1481 = vunpack.c.l.b16 %v1341
        %v1482 = vunpack.c.l.b16 %v1342
        %v1483 = vunpack.c.l.b16 %v1343
        %v1484 = vunpack.c.l.b16 %v1344
        %v1485 = vunpack.c.l.b16 %v1345
        %v1486 = vunpack.c.l.b16 %v1346
        %v1487 = vunpack.c.l.b16 %v1347
        %v1488 = vunpack.c.l.b16 %v1348
        %v1489 = vpack.c.b16 %v1426, %v1425
        %v1490 = vpack.c.b16 %v1428, %v1427
        %v1491 = vpack.c.b16 %v1430, %v1429
        %v1492 = vpack.c.b16 %v1432, %v1431
        %v1493 = vpack.c.b16 %v1434, %v1433
        %v1494 = vpack.c.b16 %v1436, %v1435
        %v1495 = vpack.c.b16 %v1438, %v1437
        %v1496 = vpack.c.b16 %v1440, %v1439
        %v1497 = vpack.c.b16 %v1442, %v1441
        %v1498 = vpack.c.b16 %v1444, %v1443
        %v1499 = vpack.c.b16 %v1446, %v1445
        %v1500 = vpack.c.b16 %v1448, %v1447
        %v1501 = vpack.c.b16 %v1450, %v1449
        %v1502 = vpack.c.b16 %v1452, %v1451
        %v1503 = vpack.c.b16 %v1454, %v1453
        %v1504 = vpack.c.b16 %v1456, %v1455
        %v1505 = vpack.c.b16 %v1458, %v1457
        %v1506 = vpack.c.b16 %v1460, %v1459
        %v1507 = vpack.c.b16 %v1462, %v1461
        %v1508 = vpack.c.b16 %v1464, %v1463
        %v1509 = vpack.c.b16 %v1466, %v1465
        %v1510 = vpack.c.b16 %v1468, %v1467
        %v1511 = vpack.c.b16 %v1470, %v1469
        %v1512 = vpack.c.b16 %v1472, %v1471
        %v1513 = vpack.c.b16 %v1474, %v1473
        %v1514 = vpack.c.b16 %v1476, %v1475
        %v1515 = vpack.c.b16 %v1478, %v1477
        %v1516 = vpack.c.b16 %v1480, %v1479
        %v1517 = vpack.c.b16 %v1482, %v1481
        %v1518 = vpack.c.b16 %v1484, %v1483
        %v1519 = vpack.c.b16 %v1486, %v1485
        %v1520 = vpack.c.b16 %v1488, %v1487
        %1553 = vmatprep.subr.bf16.mxu0 0
        %1554 = vmatpush1.bf16.msra.mxu0 %v1496
        %1555 = vmatprep.subr.bf16.mxu0 0
        %1556 = vmatpush1.bf16.msra.mxu0 %v1495
        %1557 = vmatprep.subr.bf16.mxu0 0
        %1558 = vmatpush1.bf16.msra.mxu0 %v1494
        %1559 = vmatprep.subr.bf16.mxu0 0
        %1560 = vmatpush1.bf16.msra.mxu0 %v1493
        %1561 = vmatprep.subr.bf16.mxu0 0
        %1562 = vmatpush1.bf16.msra.mxu0 %v1492
        %1563 = vmatprep.subr.bf16.mxu0 0
        %1564 = vmatpush1.bf16.msra.mxu0 %v1491
        %1565 = vmatprep.subr.bf16.mxu0 0
        %1566 = vmatpush1.bf16.msra.mxu0 %v1490
        %1567 = vmatprep.subr.bf16.mxu0 0
        %1568 = vmatpush1.bf16.msra.mxu0 %v1489
        %1569 = vmatprep.subr.bf16.mxu0 0
        %1570 = vmatpush2.bf16.msra.mxu0 %v1504
        %1571 = vmatprep.subr.bf16.mxu0 0
        %1572 = vmatpush2.bf16.msra.mxu0 %v1503
        %1573 = vmatprep.subr.bf16.mxu0 0
        %1574 = vmatpush2.bf16.msra.mxu0 %v1502
        %1575 = vmatprep.subr.bf16.mxu0 0
        %1576 = vmatpush2.bf16.msra.mxu0 %v1501
        %1577 = vmatprep.subr.bf16.mxu0 0
        %1578 = vmatpush2.bf16.msra.mxu0 %v1500
        %1579 = vmatprep.subr.bf16.mxu0 0
        %1580 = vmatpush2.bf16.msra.mxu0 %v1499
        %1581 = vmatprep.subr.bf16.mxu0 0
        %1582 = vmatpush2.bf16.msra.mxu0 %v1498
        %1583 = vmatprep.subr.bf16.mxu0 0
        %1584 = vmatpush2.bf16.msra.mxu0 %v1497
        %1585 = vmatprep.mubr.bf16.mxu0 %v1352
        %1586 = vmatmul.mubr.bf16.gmra.mxu0 %v1351
        %v1587 = vpop.f32.mrf.mxu0
        %v1588 = vadd.f32 %v1359, %v1587
        %v1589 = vpop.f32.mrf.mxu0
        %v1590 = vpop.f32.mrf.mxu0
        %v1591 = vpop.f32.mrf.mxu0
        %1592 = vdwg.mxu0
        %1593 = vmatprep.subr.bf16.mxu0 0
        %1594 = vmatpush1.bf16.msra.mxu0 %v1512
        %1595 = vmatprep.subr.bf16.mxu0 0
        %1596 = vmatpush1.bf16.msra.mxu0 %v1511
        %1597 = vmatprep.subr.bf16.mxu0 0
        %1598 = vmatpush1.bf16.msra.mxu0 %v1510
        %1599 = vmatprep.subr.bf16.mxu0 0
        %1600 = vmatpush1.bf16.msra.mxu0 %v1509
        %1601 = vmatprep.subr.bf16.mxu0 0
        %1602 = vmatpush1.bf16.msra.mxu0 %v1508
        %1603 = vmatprep.subr.bf16.mxu0 0
        %1604 = vmatpush1.bf16.msra.mxu0 %v1507
        %1605 = vmatprep.subr.bf16.mxu0 0
        %1606 = vmatpush1.bf16.msra.mxu0 %v1506
        %1607 = vmatprep.subr.bf16.mxu0 0
        %1608 = vmatpush1.bf16.msra.mxu0 %v1505
        %1609 = vmatprep.subr.bf16.mxu0 0
        %1610 = vmatpush2.bf16.msra.mxu0 %v1520
        %1611 = vmatprep.subr.bf16.mxu0 0
        %1612 = vmatpush2.bf16.msra.mxu0 %v1519
        %1613 = vmatprep.subr.bf16.mxu0 0
        %1614 = vmatpush2.bf16.msra.mxu0 %v1518
        %1615 = vmatprep.subr.bf16.mxu0 0
        %1616 = vmatpush2.bf16.msra.mxu0 %v1517
        %1617 = vmatprep.subr.bf16.mxu0 0
        %1618 = vmatpush2.bf16.msra.mxu0 %v1516
        %1619 = vmatprep.subr.bf16.mxu0 0
        %1620 = vmatpush2.bf16.msra.mxu0 %v1515
        %1621 = vmatprep.subr.bf16.mxu0 0
        %1622 = vmatpush2.bf16.msra.mxu0 %v1514
        %1623 = vmatprep.subr.bf16.mxu0 0
        %1624 = vmatpush2.bf16.msra.mxu0 %v1513
        %1625 = vmatprep.mubr.bf16.mxu0 %v1354
        %1626 = vmatmul.mubr.bf16.gmra.mxu0 %v1353
        %v1627 = vpop.f32.mrf.mxu0
        %v1628 = vadd.f32 %v1588, %v1627
        %v1629 = vpop.f32.mrf.mxu0
        %v1630 = vpop.f32.mrf.mxu0
        %v1631 = vpop.f32.mrf.mxu0
        %1632 = vdwg.mxu0
        %v1633 = vmul.f32 %v1628, 0.2
        %v1634 = vmax.f32 %v1628, %v1633
        %1635 = vst [vmem:[#allocation5] sm:$0x1] 0.0
        %1636 = vst [vmem:[#allocation5 + $0x3] sm:$0x1] 0.0
        %1637 = vst [vmem:[#allocation5 + $0x1] sm:$0x3] %v1634
        %v1638 = vld [vmem:[#allocation5] sm:$0x1]
        %v1639 = vld [vmem:[#allocation5 + $0x1] sm:$0x1]
        %v1640 = vld [vmem:[#allocation5 + $0x2] sm:$0x1]
        %v1641 = vld [vmem:[#allocation5 + $0x3] sm:$0x1]
        %s1642 = scalar_lea.vmem [#allocation6], 1024
        %v1643 = vld [vmem:[%s1642] sm:$0xf]
        %v1644 = vld [vmem:[%s1642 + $0x4] sm:$0xf]
        %v1645 = vld [vmem:[%s1642 + $0x8] sm:$0xf]
        %v1646 = vld [vmem:[%s1642 + $0xc] sm:$0xf]
        %v1647 = vld [vmem:[%s1642 + $0x10] sm:$0xf]
        %v1648 = vld [vmem:[%s1642 + $0x14] sm:$0xf]
        %v1649 = vld [vmem:[%s1642 + $0x18] sm:$0xf]
        %v1650 = vld [vmem:[%s1642 + $0x1c] sm:$0xf]
        %v1651 = vld [vmem:[%s1642 + $0x20] sm:$0xf]
        %v1652 = vld [vmem:[%s1642 + $0x24] sm:$0xf]
        %v1653 = vld [vmem:[%s1642 + $0x28] sm:$0xf]
        %v1654 = vld [vmem:[%s1642 + $0x2c] sm:$0xf]
        %v1655 = vld [vmem:[%s1642 + $0x30] sm:$0xf]
        %v1656 = vld [vmem:[%s1642 + $0x34] sm:$0xf]
        %v1657 = vld [vmem:[%s1642 + $0x38] sm:$0xf]
        %v1658 = vld [vmem:[%s1642 + $0x3c] sm:$0xf]
        %v1659 = vld [vmem:[%s1642 + $0x40] sm:$0xf]
        %v1660 = vld [vmem:[%s1642 + $0x44] sm:$0xf]
        %v1661 = vld [vmem:[%s1642 + $0x48] sm:$0xf]
        %v1662 = vld [vmem:[%s1642 + $0x4c] sm:$0xf]
        %v1663 = vld [vmem:[%s1642 + $0x50] sm:$0xf]
        %v1664 = vld [vmem:[%s1642 + $0x54] sm:$0xf]
        %v1665 = vld [vmem:[%s1642 + $0x58] sm:$0xf]
        %v1666 = vld [vmem:[%s1642 + $0x5c] sm:$0xf]
        %v1667 = vld [vmem:[%s1642 + $0x60] sm:$0xf]
        %v1668 = vld [vmem:[%s1642 + $0x64] sm:$0xf]
        %v1669 = vld [vmem:[%s1642 + $0x68] sm:$0xf]
        %v1670 = vld [vmem:[%s1642 + $0x6c] sm:$0xf]
        %v1671 = vld [vmem:[%s1642 + $0x70] sm:$0xf]
        %v1672 = vld [vmem:[%s1642 + $0x74] sm:$0xf]
        %v1673 = vld [vmem:[%s1642 + $0x78] sm:$0xf]
        %v1674 = vld [vmem:[%s1642 + $0x7c] sm:$0xf]
        %v1675 = vld [vmem:[%s1642 + $0x80] sm:$0xf]
        %v1676 = vld [vmem:[%s1642 + $0x84] sm:$0xf]
        %v1677 = vld [vmem:[%s1642 + $0x88] sm:$0xf]
        %v1678 = vld [vmem:[%s1642 + $0x8c] sm:$0xf]
        %v1679 = vld [vmem:[%s1642 + $0x90] sm:$0xf]
        %v1680 = vld [vmem:[%s1642 + $0x94] sm:$0xf]
        %v1681 = vld [vmem:[%s1642 + $0x98] sm:$0xf]
        %v1682 = vld [vmem:[%s1642 + $0x9c] sm:$0xf]
        %v1683 = vld [vmem:[%s1642 + $0xa0] sm:$0xf]
        %v1684 = vld [vmem:[%s1642 + $0xa4] sm:$0xf]
        %v1685 = vld [vmem:[%s1642 + $0xa8] sm:$0xf]
        %v1686 = vld [vmem:[%s1642 + $0xac] sm:$0xf]
        %v1687 = vld [vmem:[%s1642 + $0xb0] sm:$0xf]
        %v1688 = vld [vmem:[%s1642 + $0xb4] sm:$0xf]
        %v1689 = vld [vmem:[%s1642 + $0xb8] sm:$0xf]
        %v1690 = vld [vmem:[%s1642 + $0xbc] sm:$0xf]
        %v1691 = vld [vmem:[%s1642 + $0xc0] sm:$0xf]
        %v1692 = vld [vmem:[%s1642 + $0xc4] sm:$0xf]
        %v1693 = vld [vmem:[%s1642 + $0xc8] sm:$0xf]
        %v1694 = vld [vmem:[%s1642 + $0xcc] sm:$0xf]
        %v1695 = vld [vmem:[%s1642 + $0xd0] sm:$0xf]
        %v1696 = vld [vmem:[%s1642 + $0xd4] sm:$0xf]
        %v1697 = vld [vmem:[%s1642 + $0xd8] sm:$0xf]
        %v1698 = vld [vmem:[%s1642 + $0xdc] sm:$0xf]
        %v1699 = vld [vmem:[%s1642 + $0xe0] sm:$0xf]
        %v1700 = vld [vmem:[%s1642 + $0xe4] sm:$0xf]
        %v1701 = vld [vmem:[%s1642 + $0xe8] sm:$0xf]
        %v1702 = vld [vmem:[%s1642 + $0xec] sm:$0xf]
        %v1703 = vld [vmem:[%s1642 + $0xf0] sm:$0xf]
        %v1704 = vld [vmem:[%s1642 + $0xf4] sm:$0xf]
        %v1705 = vld [vmem:[%s1642 + $0xf8] sm:$0xf]
        %v1706 = vld [vmem:[%s1642 + $0xfc] sm:$0xf]
        %s1707 = scalar_lea.vmem %s2, 4
        %v1708 = vld [vmem:[%s1707] sm:$0x1]
        %v1709 = vpack.c.bf16 %v1638, %v1638
        %v1710 = vpack.c.bf16 %v1639, %v1639
        %v1711 = vpack.c.bf16 %v1640, %v1640
        %v1712 = vpack.c.bf16 %v1641, %v1641
        %v1777 = vunpack.c.l.b16 %v1643
        %v1778 = vunpack.c.l.b16 %v1644
        %v1779 = vunpack.c.l.b16 %v1645
        %v1780 = vunpack.c.l.b16 %v1646
        %v1781 = vunpack.c.l.b16 %v1647
        %v1782 = vunpack.c.l.b16 %v1648
        %v1783 = vunpack.c.l.b16 %v1649
        %v1784 = vunpack.c.l.b16 %v1650
        %v1785 = vunpack.c.l.b16 %v1651
        %v1786 = vunpack.c.l.b16 %v1652
        %v1787 = vunpack.c.l.b16 %v1653
        %v1788 = vunpack.c.l.b16 %v1654
        %v1789 = vunpack.c.l.b16 %v1655
        %v1790 = vunpack.c.l.b16 %v1656
        %v1791 = vunpack.c.l.b16 %v1657
        %v1792 = vunpack.c.l.b16 %v1658
        %v1793 = vunpack.c.l.b16 %v1659
        %v1794 = vunpack.c.l.b16 %v1660
        %v1795 = vunpack.c.l.b16 %v1661
        %v1796 = vunpack.c.l.b16 %v1662
        %v1797 = vunpack.c.l.b16 %v1663
        %v1798 = vunpack.c.l.b16 %v1664
        %v1799 = vunpack.c.l.b16 %v1665
        %v1800 = vunpack.c.l.b16 %v1666
        %v1801 = vunpack.c.l.b16 %v1667
        %v1802 = vunpack.c.l.b16 %v1668
        %v1803 = vunpack.c.l.b16 %v1669
        %v1804 = vunpack.c.l.b16 %v1670
        %v1805 = vunpack.c.l.b16 %v1671
        %v1806 = vunpack.c.l.b16 %v1672
        %v1807 = vunpack.c.l.b16 %v1673
        %v1808 = vunpack.c.l.b16 %v1674
        %v1809 = vunpack.c.l.b16 %v1675
        %v1810 = vunpack.c.l.b16 %v1676
        %v1811 = vunpack.c.l.b16 %v1677
        %v1812 = vunpack.c.l.b16 %v1678
        %v1813 = vunpack.c.l.b16 %v1679
        %v1814 = vunpack.c.l.b16 %v1680
        %v1815 = vunpack.c.l.b16 %v1681
        %v1816 = vunpack.c.l.b16 %v1682
        %v1817 = vunpack.c.l.b16 %v1683
        %v1818 = vunpack.c.l.b16 %v1684
        %v1819 = vunpack.c.l.b16 %v1685
        %v1820 = vunpack.c.l.b16 %v1686
        %v1821 = vunpack.c.l.b16 %v1687
        %v1822 = vunpack.c.l.b16 %v1688
        %v1823 = vunpack.c.l.b16 %v1689
        %v1824 = vunpack.c.l.b16 %v1690
        %v1825 = vunpack.c.l.b16 %v1691
        %v1826 = vunpack.c.l.b16 %v1692
        %v1827 = vunpack.c.l.b16 %v1693
        %v1828 = vunpack.c.l.b16 %v1694
        %v1829 = vunpack.c.l.b16 %v1695
        %v1830 = vunpack.c.l.b16 %v1696
        %v1831 = vunpack.c.l.b16 %v1697
        %v1832 = vunpack.c.l.b16 %v1698
        %v1833 = vunpack.c.l.b16 %v1699
        %v1834 = vunpack.c.l.b16 %v1700
        %v1835 = vunpack.c.l.b16 %v1701
        %v1836 = vunpack.c.l.b16 %v1702
        %v1837 = vunpack.c.l.b16 %v1703
        %v1838 = vunpack.c.l.b16 %v1704
        %v1839 = vunpack.c.l.b16 %v1705
        %v1840 = vunpack.c.l.b16 %v1706
        %v1841 = vpack.c.b16 %v1778, %v1777
        %v1842 = vpack.c.b16 %v1780, %v1779
        %v1843 = vpack.c.b16 %v1782, %v1781
        %v1844 = vpack.c.b16 %v1784, %v1783
        %v1845 = vpack.c.b16 %v1786, %v1785
        %v1846 = vpack.c.b16 %v1788, %v1787
        %v1847 = vpack.c.b16 %v1790, %v1789
        %v1848 = vpack.c.b16 %v1792, %v1791
        %v1849 = vpack.c.b16 %v1794, %v1793
        %v1850 = vpack.c.b16 %v1796, %v1795
        %v1851 = vpack.c.b16 %v1798, %v1797
        %v1852 = vpack.c.b16 %v1800, %v1799
        %v1853 = vpack.c.b16 %v1802, %v1801
        %v1854 = vpack.c.b16 %v1804, %v1803
        %v1855 = vpack.c.b16 %v1806, %v1805
        %v1856 = vpack.c.b16 %v1808, %v1807
        %v1857 = vpack.c.b16 %v1810, %v1809
        %v1858 = vpack.c.b16 %v1812, %v1811
        %v1859 = vpack.c.b16 %v1814, %v1813
        %v1860 = vpack.c.b16 %v1816, %v1815
        %v1861 = vpack.c.b16 %v1818, %v1817
        %v1862 = vpack.c.b16 %v1820, %v1819
        %v1863 = vpack.c.b16 %v1822, %v1821
        %v1864 = vpack.c.b16 %v1824, %v1823
        %v1865 = vpack.c.b16 %v1826, %v1825
        %v1866 = vpack.c.b16 %v1828, %v1827
        %v1867 = vpack.c.b16 %v1830, %v1829
        %v1868 = vpack.c.b16 %v1832, %v1831
        %v1869 = vpack.c.b16 %v1834, %v1833
        %v1870 = vpack.c.b16 %v1836, %v1835
        %v1871 = vpack.c.b16 %v1838, %v1837
        %v1872 = vpack.c.b16 %v1840, %v1839
        %1905 = vmatprep.subr.bf16.mxu0 0
        %1906 = vmatpush1.bf16.msra.mxu0 %v1848
        %1907 = vmatprep.subr.bf16.mxu0 0
        %1908 = vmatpush1.bf16.msra.mxu0 %v1847
        %1909 = vmatprep.subr.bf16.mxu0 0
        %1910 = vmatpush1.bf16.msra.mxu0 %v1846
        %1911 = vmatprep.subr.bf16.mxu0 0
        %1912 = vmatpush1.bf16.msra.mxu0 %v1845
        %1913 = vmatprep.subr.bf16.mxu0 0
        %1914 = vmatpush1.bf16.msra.mxu0 %v1844
        %1915 = vmatprep.subr.bf16.mxu0 0
        %1916 = vmatpush1.bf16.msra.mxu0 %v1843
        %1917 = vmatprep.subr.bf16.mxu0 0
        %1918 = vmatpush1.bf16.msra.mxu0 %v1842
        %1919 = vmatprep.subr.bf16.mxu0 0
        %1920 = vmatpush1.bf16.msra.mxu0 %v1841
        %1921 = vmatprep.subr.bf16.mxu0 0
        %1922 = vmatpush2.bf16.msra.mxu0 %v1856
        %1923 = vmatprep.subr.bf16.mxu0 0
        %1924 = vmatpush2.bf16.msra.mxu0 %v1855
        %1925 = vmatprep.subr.bf16.mxu0 0
        %1926 = vmatpush2.bf16.msra.mxu0 %v1854
        %1927 = vmatprep.subr.bf16.mxu0 0
        %1928 = vmatpush2.bf16.msra.mxu0 %v1853
        %1929 = vmatprep.subr.bf16.mxu0 0
        %1930 = vmatpush2.bf16.msra.mxu0 %v1852
        %1931 = vmatprep.subr.bf16.mxu0 0
        %1932 = vmatpush2.bf16.msra.mxu0 %v1851
        %1933 = vmatprep.subr.bf16.mxu0 0
        %1934 = vmatpush2.bf16.msra.mxu0 %v1850
        %1935 = vmatprep.subr.bf16.mxu0 0
        %1936 = vmatpush2.bf16.msra.mxu0 %v1849
        %1937 = vmatprep.mubr.bf16.mxu0 %v1710
        %1938 = vmatmul.mubr.bf16.gmra.mxu0 %v1709
        %v1939 = vpop.f32.mrf.mxu0
        %v1940 = vadd.f32 %v1708, %v1939
        %v1941 = vpop.f32.mrf.mxu0
        %v1942 = vpop.f32.mrf.mxu0
        %v1943 = vpop.f32.mrf.mxu0
        %1944 = vdwg.mxu0
        %1945 = vmatprep.subr.bf16.mxu0 0
        %1946 = vmatpush1.bf16.msra.mxu0 %v1864
        %1947 = vmatprep.subr.bf16.mxu0 0
        %1948 = vmatpush1.bf16.msra.mxu0 %v1863
        %1949 = vmatprep.subr.bf16.mxu0 0
        %1950 = vmatpush1.bf16.msra.mxu0 %v1862
        %1951 = vmatprep.subr.bf16.mxu0 0
        %1952 = vmatpush1.bf16.msra.mxu0 %v1861
        %1953 = vmatprep.subr.bf16.mxu0 0
        %1954 = vmatpush1.bf16.msra.mxu0 %v1860
        %1955 = vmatprep.subr.bf16.mxu0 0
        %1956 = vmatpush1.bf16.msra.mxu0 %v1859
        %1957 = vmatprep.subr.bf16.mxu0 0
        %1958 = vmatpush1.bf16.msra.mxu0 %v1858
        %1959 = vmatprep.subr.bf16.mxu0 0
        %1960 = vmatpush1.bf16.msra.mxu0 %v1857
        %1961 = vmatprep.subr.bf16.mxu0 0
        %1962 = vmatpush2.bf16.msra.mxu0 %v1872
        %1963 = vmatprep.subr.bf16.mxu0 0
        %1964 = vmatpush2.bf16.msra.mxu0 %v1871
        %1965 = vmatprep.subr.bf16.mxu0 0
        %1966 = vmatpush2.bf16.msra.mxu0 %v1870
        %1967 = vmatprep.subr.bf16.mxu0 0
        %1968 = vmatpush2.bf16.msra.mxu0 %v1869
        %1969 = vmatprep.subr.bf16.mxu0 0
        %1970 = vmatpush2.bf16.msra.mxu0 %v1868
        %1971 = vmatprep.subr.bf16.mxu0 0
        %1972 = vmatpush2.bf16.msra.mxu0 %v1867
        %1973 = vmatprep.subr.bf16.mxu0 0
        %1974 = vmatpush2.bf16.msra.mxu0 %v1866
        %1975 = vmatprep.subr.bf16.mxu0 0
        %1976 = vmatpush2.bf16.msra.mxu0 %v1865
        %1977 = vmatprep.mubr.bf16.mxu0 %v1712
        %1978 = vmatmul.mubr.bf16.gmra.mxu0 %v1711
        %v1979 = vpop.f32.mrf.mxu0
        %v1980 = vadd.f32 %v1940, %v1979
        %v1981 = vpop.f32.mrf.mxu0
        %v1982 = vpop.f32.mrf.mxu0
        %v1983 = vpop.f32.mrf.mxu0
        %1984 = vdwg.mxu0
        %v1985 = vpack.c.bf16 %v1980, %v1980
        %vm1986 = vcmask 1040384
        %vm1987 = vsmask.f32 256
        %vm1988 = vmand %vm1986, %vm1987
        %v1989 = vld [vmem:[%s181] sm:$0x1]
        %v1990 = vsel %vm1988, %v1985, %v1989
        %1991 = vst [vmem:[%s181] sm:$0x1] %v1990
        %p1992 = scmp.lt.s32.totalorder %s15, 1
        %s1993 = scalar_select %p1992, %s15, 1
        %s1994 = scalar_lea.vmem %s3, %s1993
        // Predicated region
        $region37: #{tpu_custom_call.1} parent=31 // pred_check
          %p1995 = pneg %p101
        $region38: #{tpu_custom_call.1} parent=31 // pred_check_branch
          %1997 = sbr.rel (%p1995) target = $region40
        $region39: #{tpu_custom_call.1} parent=31 // pred_region
          _
        $region40: #{tpu_custom_call.1} parent=31 // pred_fallthru
          _
      $region32: #{tpu_custom_call.1} parent=5 // pred_fallthru
        _
      %p1998 = scmp.le.s32.totalorder 2, %s10
      // Predicated region
      $region41: #{tpu_custom_call.1} parent=5 // pred_check
        %p1999 = pneg %p1998
      $region42: #{tpu_custom_call.1} parent=5 // pred_check_branch
        %2001 = sbr.rel (%p1999) target = $region44
      $region43: #{tpu_custom_call.1} parent=5 // pred_region
        %s2002 = ssub.s32 %s10, 2
        // Predicated region
        $region45: #{tpu_custom_call.1} parent=43 // pred_check
          %p2003 = pneg %p107
        $region46: #{tpu_custom_call.1} parent=43 // pred_check_branch
          %2005 = sbr.rel (%p2003) target = $region48
        $region47: #{tpu_custom_call.1} parent=43 // pred_region
          %p2006 = scmp.lt.s32.totalorder %s16, 1
          %s2007 = scalar_select %p2006, %s16, 1
          %s2008 = scalar_lea.vmem %s3, %s2007
        $region48: #{tpu_custom_call.1} parent=43 // pred_fallthru
          _
      $region44: #{tpu_custom_call.1} parent=5 // pred_fallthru
        _
    $region6: #{tpu_custom_call.1} parent=1 // loop_footer
      %s14 = sadd.s32 1, %s10
    $region7: #{tpu_custom_call.1} parent=1 // loop_footer_branch
      %9 = sbr.rel target = $region3
    $region8: #{tpu_custom_call.1} parent=1 // loop_exit
      _
    %2009 = vsyncpa [#allocation7], 1
    %s2010 = scalar_lea.sflag [#allocation7], 1
    %2011 = vsyncpa %s2010, 1

</llo_original>
